<compile_context>
chip_gen: v7x
topology: tpu7x:2x2x1
jax: 0.10.0
libtpu: 0.0.40
codegen_flags: <defaults>
</compile_context>

<pallas_src>
import functools
import math

import jax
import jax.numpy as jnp
from jax.experimental import pallas as pl
from jax.experimental.pallas import tpu as pltpu

INPUT_SIZE = 784
HIDDEN_SIZE = 50
HIDDEN_SIZE2 = 50
OUTPUT_SIZE = 10
NET_DIMS = [INPUT_SIZE, HIDDEN_SIZE, HIDDEN_SIZE2, OUTPUT_SIZE]

LANE = 128            # TPU lane width: hidden/output feature dims padded to this.
DEFAULT_TILE_B = 512  # batch tile: ~85% of HBM roofline in mem-bound sweeps, ~4 MiB VMEM/step.


def _round_up(x, m):
    return (x + m - 1) // m * m


def _mlp_kernel(x_ref, w1_ref, w2_ref, w3_ref, bias_ref, o_ref):
    """Fused 3-layer MLP on one (tb, 784) batch tile; weights/biases VMEM-resident."""
    # x arrives as f32 straight from HBM; cast to bf16 here (MXU-native rate),
    # accumulate in f32 via preferred_element_type.
    x = x_ref[...].astype(jnp.bfloat16)                     # (tb, 784)
    b = bias_ref[...]                                       # (8, 128) f32; rows 0..2 = b1,b2,b3

    # Layer 1: bf16 MXU matmul, f32 accumulate, f32 bias, tanh on the EUP.
    h1 = jnp.tanh(
        jnp.dot(x, w1_ref[...], preferred_element_type=jnp.float32) + b[0:1, :])
    # Layer 2: (tb, 128) @ (128, 128); padded lanes stay exactly zero (tanh(0)=0).
    h2 = jnp.tanh(
        jnp.dot(h1.astype(jnp.bfloat16), w2_ref[...],
                preferred_element_type=jnp.float32) + b[1:2, :])
    # Layer 3 (logits): lane-dense 128-wide output, only lanes [0:10] are real.
    y = jnp.dot(h2.astype(jnp.bfloat16), w3_ref[...],
                preferred_element_type=jnp.float32) + b[2:3, :]
    # bf16 store: halves output writeback bytes, still an unmasked lane-dense vst.
    o_ref[...] = y.astype(o_ref.dtype)


def prepare_params(params):
    """One-time preprocessing of PyTorch-layout params.

    Transposes weights to (in, out), zero-pads feature dims to 128 lanes, casts
    weights to bf16, and packs the three biases into one (8, 128) f32 buffer
    (rows 0..2 = b1, b2, b3). Zero padding keeps the first 50/10 lanes identical
    to the un-padded computation. Call once, reuse across forward calls.
    """
    def pad2(a, rows, cols):
        return jnp.pad(a, ((0, rows - a.shape[0]), (0, cols - a.shape[1])))

    w1 = pad2(params["W1"].T, INPUT_SIZE, LANE).astype(jnp.bfloat16)  # (784, 128)
    w2 = pad2(params["W2"].T, LANE, LANE).astype(jnp.bfloat16)        # (128, 128)
    w3 = pad2(params["W3"].T, LANE, LANE).astype(jnp.bfloat16)        # (128, 128)

    bias = jnp.zeros((8, LANE), jnp.float32)
    bias = bias.at[0, :HIDDEN_SIZE].set(params["b1"].astype(jnp.float32))
    bias = bias.at[1, :HIDDEN_SIZE2].set(params["b2"].astype(jnp.float32))
    bias = bias.at[2, :OUTPUT_SIZE].set(params["b3"].astype(jnp.float32))
    return (w1, w2, w3, bias)


@functools.partial(jax.jit, static_argnames=("tile_b",))
def network_forward(x, prepared, tile_b=DEFAULT_TILE_B):
    """Run the fused MLP Pallas kernel.

    Args:
      x: (B, 784) float32 activations (cast to bf16 inside the kernel).
      prepared: output of prepare_params (pre-transposed, lane-padded, bf16 weights).
      tile_b: max batch tile size (static; multiple of 16).
    Returns:
      (B, 10) float32 logits.
    """
    w1, w2, w3, bias = prepared
    B = x.shape[0]

    # Batch tile selection: for small batches aim for exactly two grid steps so
    # the "parallel" axis can shard across both v7x TensorCores; otherwise
    # stream full tile_b tiles. tb is always a multiple of 16 (>= sublane 8).
    if B <= 2 * tile_b:
        tb = max(16, _round_up((B + 1) // 2, 16))
    else:
        tb = tile_b
    tb = min(tb, tile_b)

    # No explicit batch pad: ragged last block is handled by Pallas; garbage
    # rows in the partial block are row-independent and never stored.
    grid = (pl.cdiv(B, tb),)

    def resident(shape):
        # Same block index every step -> weights/biases stay resident in VMEM.
        return pl.BlockSpec(shape, lambda i: (0, 0))

    out = pl.pallas_call(
        _mlp_kernel,
        out_shape=jax.ShapeDtypeStruct((B, LANE), jnp.bfloat16),
        grid=grid,
        in_specs=[
            pl.BlockSpec((tb, INPUT_SIZE), lambda i: (i, 0)),  # x (f32): pipelined per tile
            resident((INPUT_SIZE, LANE)),                      # W1 (784, 128) bf16
            resident((LANE, LANE)),                            # W2 (128, 128) bf16
            resident((LANE, LANE)),                            # W3 (128, 128) bf16
            resident((8, LANE)),                               # packed biases (8, 128) f32
        ],
        out_specs=pl.BlockSpec((tb, LANE), lambda i: (i, 0)),  # lane-dense bf16 output
        compiler_params=pltpu.CompilerParams(
            dimension_semantics=("parallel",),  # v7x: shard batch tiles over 2 TCs
        ),
    )(x, w1, w2, w3, bias)

    return out[:, :OUTPUT_SIZE].astype(jnp.float32)


def init_params(key):
    """Deterministic PyTorch-style nn.Linear init: U(-1/sqrt(fan_in), 1/sqrt(fan_in))."""
    params = {}
    for i in range(len(NET_DIMS) - 1):
        fan_in, fan_out = NET_DIMS[i], NET_DIMS[i + 1]
        key, kw, kb = jax.random.split(key, 3)
        bound = 1.0 / math.sqrt(fan_in)
        params[f"W{i + 1}"] = jax.random.uniform(
            kw, (fan_out, fan_in), jnp.float32, minval=-bound, maxval=bound
        )
        params[f"b{i + 1}"] = jax.random.uniform(
            kb, (fan_out,), jnp.float32, minval=-bound, maxval=bound
        )
    return params


def _reference_forward(x, params):
    h1 = jnp.tanh(x @ params["W1"].T + params["b1"])
    h2 = jnp.tanh(h1 @ params["W2"].T + params["b2"])
    return h2 @ params["W3"].T + params["b3"]


if __name__ == "__main__":
    key = jax.random.PRNGKey(0)
    key, kx1, kx2 = jax.random.split(key, 3)
    params = init_params(key)
    prepared = prepare_params(params)

    # Case 1: module BATCH_SIZE=100 -> tb=64, 2 grid steps, ragged last block
    # (exercises the no-pad partial-block path and the 2-TC small-batch split).
    x_small = jax.random.normal(kx1, (100, INPUT_SIZE), dtype=jnp.float32)
    out_small = jax.block_until_ready(network_forward(x_small, prepared))
    ref_small = jax.block_until_ready(_reference_forward(x_small, params))
    assert out_small.shape == (100, OUTPUT_SIZE)
    assert jnp.allclose(out_small, ref_small, atol=5e-2, rtol=5e-2), (
        float(jnp.max(jnp.abs(out_small - ref_small))))

    # Case 2: B=1024 -> two full 512-row tiles (exercises the large-tile
    # pipelined grid with evenly split blocks).
    x_big = jax.random.normal(kx2, (1024, INPUT_SIZE), dtype=jnp.float32)
    out_big = jax.block_until_ready(network_forward(x_big, prepared))
    ref_big = jax.block_until_ready(_reference_forward(x_big, params))
    assert out_big.shape == (1024, OUTPUT_SIZE)
    assert jnp.allclose(out_big, ref_big, atol=5e-2, rtol=5e-2), (
        float(jnp.max(jnp.abs(out_big - ref_big))))

    print("KERNEL_OK")
</pallas_src>

<mosaic_0001>
module attributes {stable_mosaic.version = 11 : i64} {
  func.func @_mlp_kernel(%arg0: i32, %arg1: memref<64x784xf32, #tpu.memory_space<vmem>>, %arg2: memref<784x128xbf16, #tpu.memory_space<vmem>>, %arg3: memref<128x128xbf16, #tpu.memory_space<vmem>>, %arg4: memref<128x128xbf16, #tpu.memory_space<vmem>>, %arg5: memref<8x128xf32, #tpu.memory_space<vmem>>, %arg6: memref<64x128xbf16, #tpu.memory_space<vmem>>) attributes {dimension_semantics = [#tpu.dimension_semantics<parallel>], iteration_bounds = array<i64: 2>, scalar_prefetch = 0 : i64, scratch_operands = 0 : i64, tpu.core_type = #tpu.core_type<tc>, window_params = [{transform_indices = @transform_0, window_bounds = array<i64: 64, 784>}, {pipeline_mode = #tpu.pipeline_mode<synchronous>, transform_indices = @transform_1, window_bounds = array<i64: 784, 128>}, {pipeline_mode = #tpu.pipeline_mode<synchronous>, transform_indices = @transform_2, window_bounds = array<i64: 128, 128>}, {pipeline_mode = #tpu.pipeline_mode<synchronous>, transform_indices = @transform_3, window_bounds = array<i64: 128, 128>}, {pipeline_mode = #tpu.pipeline_mode<synchronous>, transform_indices = @transform_4, window_bounds = array<i64: 8, 128>}, {transform_indices = @transform_5, window_bounds = array<i64: 64, 128>}]} {
    %c0 = arith.constant 0 : index
    %c0_0 = arith.constant 0 : index
    %0 = vector.load %arg1[%c0, %c0_0] : memref<64x784xf32, #tpu.memory_space<vmem>>, vector<64x784xf32>
    %1 = arith.truncf %0 : vector<64x784xf32> to vector<64x784xbf16>
    %c0_1 = arith.constant 0 : index
    %c0_2 = arith.constant 0 : index
    %2 = vector.load %arg5[%c0_1, %c0_2] : memref<8x128xf32, #tpu.memory_space<vmem>>, vector<8x128xf32>
    %c0_3 = arith.constant 0 : index
    %c0_4 = arith.constant 0 : index
    %3 = vector.load %arg2[%c0_3, %c0_4] : memref<784x128xbf16, #tpu.memory_space<vmem>>, vector<784x128xbf16>
    %cst = arith.constant dense<0.000000e+00> : vector<64x128xf32>
    %4 = tpu.matmul %1, %3, %cst {dimension_numbers = #tpu.dot_dimension_numbers<[1], [0], [0], [1], [0, 0, 1, 1], [], []>} : vector<64x784xbf16>, vector<784x128xbf16>, vector<64x128xf32> -> vector<64x128xf32>
    %5 = vector.extract_strided_slice %2 {offsets = [0, 0], sizes = [1, 128], strides = [1, 1]} : vector<8x128xf32> to vector<1x128xf32>
    %6 = vector.broadcast %5 : vector<1x128xf32> to vector<64x128xf32>
    %7 = arith.addf %4, %6 : vector<64x128xf32>
    %8 = math.tanh %7 : vector<64x128xf32>
    %9 = arith.truncf %8 : vector<64x128xf32> to vector<64x128xbf16>
    %c0_5 = arith.constant 0 : index
    %c0_6 = arith.constant 0 : index
    %10 = vector.load %arg3[%c0_5, %c0_6] : memref<128x128xbf16, #tpu.memory_space<vmem>>, vector<128x128xbf16>
    %cst_7 = arith.constant dense<0.000000e+00> : vector<64x128xf32>
    %11 = tpu.matmul %9, %10, %cst_7 {dimension_numbers = #tpu.dot_dimension_numbers<[1], [0], [0], [1], [0, 0, 1, 1], [], []>} : vector<64x128xbf16>, vector<128x128xbf16>, vector<64x128xf32> -> vector<64x128xf32>
    %12 = vector.extract_strided_slice %2 {offsets = [1, 0], sizes = [1, 128], strides = [1, 1]} : vector<8x128xf32> to vector<1x128xf32>
    %13 = vector.broadcast %12 : vector<1x128xf32> to vector<64x128xf32>
    %14 = arith.addf %11, %13 : vector<64x128xf32>
    %15 = math.tanh %14 : vector<64x128xf32>
    %16 = arith.truncf %15 : vector<64x128xf32> to vector<64x128xbf16>
    %c0_8 = arith.constant 0 : index
    %c0_9 = arith.constant 0 : index
    %17 = vector.load %arg4[%c0_8, %c0_9] : memref<128x128xbf16, #tpu.memory_space<vmem>>, vector<128x128xbf16>
    %cst_10 = arith.constant dense<0.000000e+00> : vector<64x128xf32>
    %18 = tpu.matmul %16, %17, %cst_10 {dimension_numbers = #tpu.dot_dimension_numbers<[1], [0], [0], [1], [0, 0, 1, 1], [], []>} : vector<64x128xbf16>, vector<128x128xbf16>, vector<64x128xf32> -> vector<64x128xf32>
    %19 = vector.extract_strided_slice %2 {offsets = [2, 0], sizes = [1, 128], strides = [1, 1]} : vector<8x128xf32> to vector<1x128xf32>
    %20 = vector.broadcast %19 : vector<1x128xf32> to vector<64x128xf32>
    %21 = arith.addf %18, %20 : vector<64x128xf32>
    %22 = arith.truncf %21 : vector<64x128xf32> to vector<64x128xbf16>
    %c0_11 = arith.constant 0 : index
    %c0_12 = arith.constant 0 : index
    %23 = vector.load %arg6[%c0_11, %c0_12] : memref<64x128xbf16, #tpu.memory_space<vmem>>, vector<64x128xbf16>
    tpu.vector_store %arg6[%c0_11, %c0_12], %22 {strides = array<i32>} : memref<64x128xbf16, #tpu.memory_space<vmem>>, vector<64x128xbf16>,
    return
  }
  func.func @transform_0(%arg0: i32) -> (i32, i32) {
    %c0_i32 = arith.constant 0 : i32
    %c0_i32_0 = arith.constant 0 : i32
    return %arg0, %c0_i32 : i32, i32
  }
  func.func @transform_1(%arg0: i32) -> (i32, i32) {
    %c0_i32 = arith.constant 0 : i32
    %c0_i32_0 = arith.constant 0 : i32
    %c0_i32_1 = arith.constant 0 : i32
    return %c0_i32, %c0_i32_0 : i32, i32
  }
  func.func @transform_2(%arg0: i32) -> (i32, i32) {
    %c0_i32 = arith.constant 0 : i32
    %c0_i32_0 = arith.constant 0 : i32
    %c0_i32_1 = arith.constant 0 : i32
    return %c0_i32, %c0_i32_0 : i32, i32
  }
  func.func @transform_3(%arg0: i32) -> (i32, i32) {
    %c0_i32 = arith.constant 0 : i32
    %c0_i32_0 = arith.constant 0 : i32
    %c0_i32_1 = arith.constant 0 : i32
    return %c0_i32, %c0_i32_0 : i32, i32
  }
  func.func @transform_4(%arg0: i32) -> (i32, i32) {
    %c0_i32 = arith.constant 0 : i32
    %c0_i32_0 = arith.constant 0 : i32
    %c0_i32_1 = arith.constant 0 : i32
    return %c0_i32, %c0_i32_0 : i32, i32
  }
  func.func @transform_5(%arg0: i32) -> (i32, i32) {
    %c0_i32 = arith.constant 0 : i32
    %c0_i32_0 = arith.constant 0 : i32
    return %arg0, %c0_i32 : i32, i32
  }
}

</mosaic_0001>

<llo_original>
// kernel: network_forward.1
$region0: #{network_forward.1}
  #allocation0 [shape = 'u32[]', space=smem, size = 0x4, offset = 0x4, fixed_abs, tag = 'smem constant byte address 0x4 - core index']
  #allocation1 [shape = 'u32[144,128]{1,0:T(1,128)}', space=vmem, size = 0x12000, scoped, tag = 'internal scratch']
  %s0 = inlined_call_operand.hbm [shape: f32[100,784], index: 0, kind: input, shape index: {}]
  %s1 = inlined_call_operand.hbm [shape: bf16[784,128], index: 1, kind: input, shape index: {}]
  %s2 = inlined_call_operand.hbm [shape: bf16[128,128], index: 2, kind: input, shape index: {}]
  %s3 = inlined_call_operand.hbm [shape: bf16[128,128], index: 3, kind: input, shape index: {}]
  %s4 = inlined_call_operand.vmem [shape: f32[8,128], index: 4, kind: input, shape index: {}]
  %s5 = inlined_call_operand.vmem [shape: bf16[100,128], index: 5, kind: output, shape index: {}]
  %s6 = sld [smem:[#allocation0]]
  $region113: #{network_forward.1} parent=0
    _
  %s8 = ssub.s32 1, %s6
  %s9 = scalar_select 0, %s8, %s6
  $region1: #{network_forward.1} parent=0
    #allocation2 [shape = 'u8[458752]{0}', space=vmem, size = 0x70000, scoped, tag = 'input window, operand 0']
    #allocation3 [shape = 's32[2]{0}', space=sflag, size = 0x8, scoped, tag = 'scoped memory for network_forward.1']
    #allocation4 [shape = 'u8[200704]{0}', space=vmem, size = 0x31000, scoped, tag = 'input window, operand 1, single buffered']
    #allocation5 [shape = 's32[1]{0}', space=sflag, size = 0x4, scoped, tag = 'scoped memory for network_forward.1']
    #allocation6 [shape = 'u8[32768]{0}', space=vmem, size = 0x8000, scoped, tag = 'input window, operand 2, single buffered']
    #allocation7 [shape = 'u8[32768]{0}', space=vmem, size = 0x8000, scoped, tag = 'input window, operand 3, single buffered']
    #allocation8 [shape = 's32[1]{0}', space=sflag, size = 0x4, scoped, tag = 'scoped memory for network_forward.1']
    #allocation9 [shape = 'u8[32768]{0}', space=vmem, size = 0x8000, scoped, tag = 'output window, operand 0']
    %10 = vsyncpa [#allocation3], 0
    %s11 = scalar_lea.sflag [#allocation3], 1
    %12 = vsyncpa %s11, 0
    %13 = vsyncpa [#allocation5], 0
    %14 = vsyncpa [#allocation8], 0
    loop: start=0, step=1, limit=4
    $region2: #{network_forward.1} parent=1 // loop_pre_header
      _
    $region3: #{network_forward.1} parent=1 // loop_header
      %s16 = sphi 0, %s20
      %p17 = scmp.ge.s32.totalorder %s16, 4
      %s26 = sphi 0, %s28
      %s29 = sphi 0, %s26
      %s30 = sphi 0, %s29
      %s46 = sphi 0, %s30
      %s50 = sphi 0, %s50
      %s52 = sphi 0, %s50
      %s53 = sphi 0, %s52
      %s67 = sphi 0, %s53
      %s71 = sphi 0, %s71
      %s73 = sphi 0, %s71
      %s74 = sphi 0, %s73
      %s88 = sphi 0, %s74
      %s92 = sphi 0, %s92
      %s94 = sphi 0, %s92
      %s95 = sphi 0, %s94
      %s109 = sphi 0, %s95
      %s113 = sphi 0, %s113
      %s115 = sphi 0, %s113
      %s116 = sphi 0, %s115
      %s130 = sphi 0, %s116
      %s136 = sphi 0, %s138
      %s139 = sphi 0, %s136
      %s140 = sphi 0, %s139
      %s156 = sphi 0, %s140
    $region4: #{network_forward.1} parent=1 // loop_header_branch
      %19 = sbr.rel (%p17) target = $region8
    $region5: #{network_forward.1} parent=1 // loop_body
      %s21 = ssub.s32 %s16, 1
      %s22 = ssub.s32 %s16, 2
      %s23 = sadd.s32 %s16, 1
      %s24 = ssub.s32 %s16, %s23
      %p25 = scmp.eq.s32.totalorder %s24, 0
      %s27 = sadd.s32 %s26, 1
      %s28 = scalar_select %p25, %s26, %s27
      %p31 = pneg %p25
      %p32 = scmp.eq.s32.totalorder %s16, 1
      %p33 = por %p31, %p32
      %p34 = scmp.ne.s32.totalorder %s26, %s29
      %p35 = scmp.eq.s32.totalorder %s16, 0
      %p36 = por %p34, %p35
      %p37 = scmp.ne.s32.totalorder %s26, %s29
      %p38 = scmp.eq.s32.totalorder %s21, 1
      %p39 = por %p37, %p38
      %p40 = scmp.ne.s32.totalorder %s29, %s30
      %p41 = scmp.eq.s32.totalorder %s21, 0
      %p42 = por %p40, %p41
      %p43 = scmp.ne.s32.totalorder %s29, %s30
      %p44 = scmp.eq.s32.totalorder %s22, 1
      %p45 = por %p43, %p44
      %p47 = scmp.ne.s32.totalorder %s30, %s46
      %p48 = scmp.eq.s32.totalorder %s22, 0
      %p49 = por %p47, %p48
      %s51 = sadd.s32 %s50, 1
      %p54 = scmp.eq.s32.totalorder %s16, 1
      %p55 = scmp.ne.s32.totalorder %s50, %s52
      %p56 = scmp.eq.s32.totalorder %s16, 0
      %p57 = por %p55, %p56
      %p58 = scmp.ne.s32.totalorder %s50, %s52
      %p59 = scmp.eq.s32.totalorder %s21, 1
      %p60 = por %p58, %p59
      %p61 = scmp.ne.s32.totalorder %s52, %s53
      %p62 = scmp.eq.s32.totalorder %s21, 0
      %p63 = por %p61, %p62
      %p64 = scmp.ne.s32.totalorder %s52, %s53
      %p65 = scmp.eq.s32.totalorder %s22, 1
      %p66 = por %p64, %p65
      %p68 = scmp.ne.s32.totalorder %s53, %s67
      %p69 = scmp.eq.s32.totalorder %s22, 0
      %p70 = por %p68, %p69
      %s72 = sadd.s32 %s71, 1
      %p75 = scmp.eq.s32.totalorder %s16, 1
      %p76 = scmp.ne.s32.totalorder %s71, %s73
      %p77 = scmp.eq.s32.totalorder %s16, 0
      %p78 = por %p76, %p77
      %p79 = scmp.ne.s32.totalorder %s71, %s73
      %p80 = scmp.eq.s32.totalorder %s21, 1
      %p81 = por %p79, %p80
      %p82 = scmp.ne.s32.totalorder %s73, %s74
      %p83 = scmp.eq.s32.totalorder %s21, 0
      %p84 = por %p82, %p83
      %p85 = scmp.ne.s32.totalorder %s73, %s74
      %p86 = scmp.eq.s32.totalorder %s22, 1
      %p87 = por %p85, %p86
      %p89 = scmp.ne.s32.totalorder %s74, %s88
      %p90 = scmp.eq.s32.totalorder %s22, 0
      %p91 = por %p89, %p90
      %s93 = sadd.s32 %s92, 1
      %p96 = scmp.eq.s32.totalorder %s16, 1
      %p97 = scmp.ne.s32.totalorder %s92, %s94
      %p98 = scmp.eq.s32.totalorder %s16, 0
      %p99 = por %p97, %p98
      %p100 = scmp.ne.s32.totalorder %s92, %s94
      %p101 = scmp.eq.s32.totalorder %s21, 1
      %p102 = por %p100, %p101
      %p103 = scmp.ne.s32.totalorder %s94, %s95
      %p104 = scmp.eq.s32.totalorder %s21, 0
      %p105 = por %p103, %p104
      %p106 = scmp.ne.s32.totalorder %s94, %s95
      %p107 = scmp.eq.s32.totalorder %s22, 1
      %p108 = por %p106, %p107
      %p110 = scmp.ne.s32.totalorder %s95, %s109
      %p111 = scmp.eq.s32.totalorder %s22, 0
      %p112 = por %p110, %p111
      %s114 = sadd.s32 %s113, 1
      %p117 = scmp.eq.s32.totalorder %s16, 1
      %p118 = scmp.ne.s32.totalorder %s113, %s115
      %p119 = scmp.eq.s32.totalorder %s16, 0
      %p120 = por %p118, %p119
      %p121 = scmp.ne.s32.totalorder %s113, %s115
      %p122 = scmp.eq.s32.totalorder %s21, 1
      %p123 = por %p121, %p122
      %p124 = scmp.ne.s32.totalorder %s115, %s116
      %p125 = scmp.eq.s32.totalorder %s21, 0
      %p126 = por %p124, %p125
      %p127 = scmp.ne.s32.totalorder %s115, %s116
      %p128 = scmp.eq.s32.totalorder %s22, 1
      %p129 = por %p127, %p128
      %p131 = scmp.ne.s32.totalorder %s116, %s130
      %p132 = scmp.eq.s32.totalorder %s22, 0
      %p133 = por %p131, %p132
      %s134 = ssub.s32 %s16, %s23
      %p135 = scmp.eq.s32.totalorder %s134, 0
      %s137 = sadd.s32 %s136, 1
      %s138 = scalar_select %p135, %s136, %s137
      %p141 = pneg %p135
      %p142 = scmp.eq.s32.totalorder %s16, 1
      %p143 = por %p141, %p142
      %p144 = scmp.ne.s32.totalorder %s136, %s139
      %p145 = scmp.eq.s32.totalorder %s16, 0
      %p146 = por %p144, %p145
      %p147 = scmp.ne.s32.totalorder %s136, %s139
      %p148 = scmp.eq.s32.totalorder %s21, 1
      %p149 = por %p147, %p148
      %p150 = scmp.ne.s32.totalorder %s139, %s140
      %p151 = scmp.eq.s32.totalorder %s21, 0
      %p152 = por %p150, %p151
      %p153 = scmp.ne.s32.totalorder %s139, %s140
      %p154 = scmp.eq.s32.totalorder %s22, 1
      %p155 = por %p153, %p154
      %p157 = scmp.ne.s32.totalorder %s140, %s156
      %p158 = scmp.eq.s32.totalorder %s22, 0
      %p159 = por %p157, %p158
      %p160 = scmp.le.s32.totalorder 1, %s16
      %p161 = scmp.lt.s32.totalorder %s16, 3
      %p162 = pnand %p160, %p161
      %p163 = pneg %p162
      // Predicated region
      $region9: #{network_forward.1} parent=5 // pred_check
        _
      $region10: #{network_forward.1} parent=5 // pred_check_branch
        %165 = sbr.rel (%p162) target = $region12
      $region11: #{network_forward.1} parent=5 // pred_region
        %s166 = ssub.s32 %s16, 1
        // Predicated region
        $region13: #{network_forward.1} parent=11 // pred_check
          %p167 = pneg %p63
        $region14: #{network_forward.1} parent=11 // pred_check_branch
          %169 = sbr.rel (%p167) target = $region16
        $region15: #{network_forward.1} parent=11 // pred_region
          %s171 = ssub.s32 6272, 6272
          %172 = vsyncadd [#allocation5], %s171
          %s173 = sshll.u32 [#allocation4], 4
          %s174 = int_to_ptr.vmem [resolvable:$true] %s173
          %179 = dma.hbm_to_vmem [thread:$0]  %s1, 6272, %s174, [#allocation5], 64, 64, 4
        $region16: #{network_forward.1} parent=11 // pred_fallthru
          _
        // Predicated region
        $region17: #{network_forward.1} parent=11 // pred_check
          %p180 = pneg %p84
        $region18: #{network_forward.1} parent=11 // pred_check_branch
          %182 = sbr.rel (%p180) target = $region20
        $region19: #{network_forward.1} parent=11 // pred_region
          %s184 = ssub.s32 1024, 1024
          %185 = vsyncadd [#allocation5], %s184
          %s186 = sshll.u32 [#allocation6], 4
          %s187 = int_to_ptr.vmem [resolvable:$true] %s186
          %192 = dma.hbm_to_vmem [thread:$0]  %s2, 1024, %s187, [#allocation5], 64, 64, 4
        $region20: #{network_forward.1} parent=11 // pred_fallthru
          _
        // Predicated region
        $region21: #{network_forward.1} parent=11 // pred_check
          %p193 = pneg %p105
        $region22: #{network_forward.1} parent=11 // pred_check_branch
          %195 = sbr.rel (%p193) target = $region24
        $region23: #{network_forward.1} parent=11 // pred_region
          %s197 = ssub.s32 1024, 1024
          %198 = vsyncadd [#allocation8], %s197
          %s199 = sshll.u32 [#allocation7], 4
          %s200 = int_to_ptr.vmem [resolvable:$true] %s199
          %205 = dma.hbm_to_vmem [thread:$0]  %s3, 1024, %s200, [#allocation8], 64, 64, 4
        $region24: #{network_forward.1} parent=11 // pred_fallthru
          _
        // Predicated region
        $region25: #{network_forward.1} parent=11 // pred_check
          %p206 = pneg %p126
        $region26: #{network_forward.1} parent=11 // pred_check_branch
          %208 = sbr.rel (%p206) target = $region28
        $region27: #{network_forward.1} parent=11 // pred_region
          _
        $region28: #{network_forward.1} parent=11 // pred_fallthru
          _
      $region12: #{network_forward.1} parent=5 // pred_fallthru
        _
      %p209 = scmp.lt.s32.totalorder %s16, 2
      // Predicated region
      $region29: #{network_forward.1} parent=5 // pred_check
        %p210 = pneg %p209
      $region30: #{network_forward.1} parent=5 // pred_check_branch
        %212 = sbr.rel (%p210) target = $region32
      $region31: #{network_forward.1} parent=5 // pred_region
        // Predicated region
        $region33: #{network_forward.1} parent=31 // pred_check
          %p213 = pneg %p36
        $region34: #{network_forward.1} parent=31 // pred_check_branch
          %215 = sbr.rel (%p213) target = $region36
        $region35: #{network_forward.1} parent=31 // pred_region
          %s216 = sand.u32 %s26, 1
          %s217 = scalar_lea.sflag [#allocation3], %s216
          %s218 = sand.u32 %s26, 1
          %s219 = smul.addr %s218, 448
          %s220 = scalar_lea.vmem [#allocation2], %s219
          %s221 = smul.u32 8, %s16
          %s222 = ssub.s32 13, %s221
          %p223 = scmp.lt.s32.totalorder %s222, 8
          %s224 = scalar_select %p223, %s222, 8
          %s225 = smul.u32 128, %s224
          %s226 = smul.u32 %s225, 7
          %s228 = ssub.s32 7168, %s226
          %229 = vsyncadd %s217, %s228
          %p230 = scmp.ne.s32.totalorder 0, %s226
          %s231 = smul.addr %s221, 7
          %s232 = smul.addr %s231, 128
          %s233 = scalar_lea.hbm %s0, %s232
          %s234 = smul.u32 56, %s224
          %s235 = sshll.u32 %s220, 4
          %s236 = int_to_ptr.vmem [resolvable:$true] %s235
          %s237 = sshll.u32 %s234, 4
          %241 = dma.hbm_to_vmem [thread:$0]  (%p230), %s233, %s237, %s236, %s217, 896, 896, 56
        $region36: #{network_forward.1} parent=31 // pred_fallthru
          _
      $region32: #{network_forward.1} parent=5 // pred_fallthru
        _
      %p242 = scmp.le.s32.totalorder 1, %s16
      %p243 = scmp.lt.s32.totalorder %s16, 3
      %p244 = pnand %p242, %p243
      %p245 = pneg %p244
      // Predicated region
      $region37: #{network_forward.1} parent=5 // pred_check
        _
      $region38: #{network_forward.1} parent=5 // pred_check_branch
        %247 = sbr.rel (%p244) target = $region40
      $region39: #{network_forward.1} parent=5 // pred_region
        %s248 = ssub.s32 %s16, 1
        %s249 = sand.u32 %s29, 1
        %s250 = scalar_lea.sflag [#allocation3], %s249
        %s251 = sand.u32 %s29, 1
        %s252 = smul.addr %s251, 448
        %s253 = scalar_lea.vmem [#allocation2], %s252
        // Predicated region
        $region41: #{network_forward.1} parent=39 // pred_check
          %p254 = pneg %p42
        $region42: #{network_forward.1} parent=39 // pred_check_branch
          %256 = sbr.rel (%p254) target = $region44
        $region43: #{network_forward.1} parent=39 // pred_region
          %257 = dma.done %s250, 7168
        $region44: #{network_forward.1} parent=39 // pred_fallthru
          _
        // Predicated region
        $region45: #{network_forward.1} parent=39 // pred_check
          %p258 = pneg %p63
        $region46: #{network_forward.1} parent=39 // pred_check_branch
          %260 = sbr.rel (%p258) target = $region48
        $region47: #{network_forward.1} parent=39 // pred_region
          %261 = dma.done [#allocation5], 6272
        $region48: #{network_forward.1} parent=39 // pred_fallthru
          _
        // Predicated region
        $region49: #{network_forward.1} parent=39 // pred_check
          %p262 = pneg %p84
        $region50: #{network_forward.1} parent=39 // pred_check_branch
          %264 = sbr.rel (%p262) target = $region52
        $region51: #{network_forward.1} parent=39 // pred_region
          %265 = dma.done [#allocation5], 1024
        $region52: #{network_forward.1} parent=39 // pred_fallthru
          _
        // Predicated region
        $region53: #{network_forward.1} parent=39 // pred_check
          %p266 = pneg %p105
        $region54: #{network_forward.1} parent=39 // pred_check_branch
          %268 = sbr.rel (%p266) target = $region56
        $region55: #{network_forward.1} parent=39 // pred_region
          %269 = dma.done [#allocation8], 1024
        $region56: #{network_forward.1} parent=39 // pred_fallthru
          _
        %s270 = sand.u32 %s29, 1
        %s271 = scalar_lea.sflag [#allocation3], %s270
        %s272 = sand.u32 %s29, 1
        %s273 = smul.addr %s272, 448
        %s274 = scalar_lea.vmem [#allocation2], %s273
        %p275 = pneg %p42
        %p276 = pneg %p39
        %p277 = pneg %p63
        %p278 = pneg %p60
        %p279 = pneg %p84
        %p280 = pneg %p81
        %p281 = pneg %p105
        %p282 = pneg %p102
        %p283 = pneg %p126
        %p284 = pneg %p123
        %p285 = pneg %p152
        %p286 = pneg %p149
        %s287 = sand.u32 %s139, 1
        %s288 = sand.u32 %s139, 1
        %s289 = smul.addr %s288, 32
        %s290 = scalar_lea.vmem [#allocation9], %s289
        %s291 = smul.u32 8, %s21
        %s292 = ssub.s32 13, %s291
        %p293 = scmp.lt.s32.totalorder %s292, 8
        %s294 = scalar_select %p293, %s292, 8
        %s295 = smul.u32 128, %s294
        %s296 = smul.u32 %s295, 7
        %s297 = smul.u32 8, %s21
        %s298 = ssub.s32 13, %s297
        %p299 = scmp.lt.s32.totalorder %s298, 8
        %s300 = scalar_select %p299, %s298, 8
        %s301 = smul.u32 64, %s300
        %v303 = vld [vmem:[%s253] sm:$0xff]
        %v304 = vld [vmem:[%s253 + $0x8] sm:$0xff]
        %v305 = vld [vmem:[%s253 + $0x10] sm:$0xff]
        %v306 = vld [vmem:[%s253 + $0x18] sm:$0xff]
        %v307 = vld [vmem:[%s253 + $0x20] sm:$0xff]
        %v308 = vld [vmem:[%s253 + $0x28] sm:$0xff]
        %v309 = vld [vmem:[%s253 + $0x30] sm:$0xff]
        %v310 = vld [vmem:[%s253 + $0x38] sm:$0xff]
        %v311 = vld [vmem:[%s253 + $0x40] sm:$0xff]
        %v312 = vld [vmem:[%s253 + $0x48] sm:$0xff]
        %v313 = vld [vmem:[%s253 + $0x50] sm:$0xff]
        %v314 = vld [vmem:[%s253 + $0x58] sm:$0xff]
        %v315 = vld [vmem:[%s253 + $0x60] sm:$0xff]
        %v316 = vld [vmem:[%s253 + $0x68] sm:$0xff]
        %v317 = vld [vmem:[%s253 + $0x70] sm:$0xff]
        %v318 = vld [vmem:[%s253 + $0x78] sm:$0xff]
        %v319 = vld [vmem:[%s253 + $0x80] sm:$0xff]
        %v320 = vld [vmem:[%s253 + $0x88] sm:$0xff]
        %v321 = vld [vmem:[%s253 + $0x90] sm:$0xff]
        %v322 = vld [vmem:[%s253 + $0x98] sm:$0xff]
        %v323 = vld [vmem:[%s253 + $0xa0] sm:$0xff]
        %v324 = vld [vmem:[%s253 + $0xa8] sm:$0xff]
        %v325 = vld [vmem:[%s253 + $0xb0] sm:$0xff]
        %v326 = vld [vmem:[%s253 + $0xb8] sm:$0xff]
        %v327 = vld [vmem:[%s253 + $0xc0] sm:$0xff]
        %v328 = vld [vmem:[%s253 + $0xc8] sm:$0xff]
        %v329 = vld [vmem:[%s253 + $0xd0] sm:$0xff]
        %v330 = vld [vmem:[%s253 + $0xd8] sm:$0xff]
        %v331 = vld [vmem:[%s253 + $0xe0] sm:$0xff]
        %v332 = vld [vmem:[%s253 + $0xe8] sm:$0xff]
        %v333 = vld [vmem:[%s253 + $0xf0] sm:$0xff]
        %v334 = vld [vmem:[%s253 + $0xf8] sm:$0xff]
        %v335 = vld [vmem:[%s253 + $0x100] sm:$0xff]
        %v336 = vld [vmem:[%s253 + $0x108] sm:$0xff]
        %v337 = vld [vmem:[%s253 + $0x110] sm:$0xff]
        %v338 = vld [vmem:[%s253 + $0x118] sm:$0xff]
        %v339 = vld [vmem:[%s253 + $0x120] sm:$0xff]
        %v340 = vld [vmem:[%s253 + $0x128] sm:$0xff]
        %v341 = vld [vmem:[%s253 + $0x130] sm:$0xff]
        %v342 = vld [vmem:[%s253 + $0x138] sm:$0xff]
        %v343 = vld [vmem:[%s253 + $0x140] sm:$0xff]
        %v344 = vld [vmem:[%s253 + $0x148] sm:$0xff]
        %v345 = vld [vmem:[%s253 + $0x150] sm:$0xff]
        %v346 = vld [vmem:[%s253 + $0x158] sm:$0xff]
        %v347 = vld [vmem:[%s253 + $0x160] sm:$0xff]
        %v348 = vld [vmem:[%s253 + $0x168] sm:$0xff]
        %v349 = vld [vmem:[%s253 + $0x170] sm:$0xff]
        %v350 = vld [vmem:[%s253 + $0x178] sm:$0xff]
        %v351 = vld [vmem:[%s253 + $0x180] sm:$0xff]
        %v352 = vld [vmem:[%s253 + $0x188] sm:$0xff]
        %v353 = vld [vmem:[%s253 + $0x190] sm:$0xff]
        %v354 = vld [vmem:[%s253 + $0x198] sm:$0xff]
        %v355 = vld [vmem:[%s253 + $0x1a0] sm:$0xff]
        %v356 = vld [vmem:[%s253 + $0x1a8] sm:$0xff]
        %v357 = vld [vmem:[%s253 + $0x1b0] sm:$0xff]
        %v358 = vld [vmem:[%s253 + $0x1b8] sm:$0xff]
        %v359 = vpack.c.bf16 %v310, %v303
        %v360 = vpack.c.bf16 %v311, %v304
        %v361 = vpack.c.bf16 %v312, %v305
        %v362 = vpack.c.bf16 %v313, %v306
        %v363 = vpack.c.bf16 %v314, %v307
        %v364 = vpack.c.bf16 %v315, %v308
        %v365 = vpack.c.bf16 %v316, %v309
        %v366 = vpack.c.bf16 %v324, %v317
        %v367 = vpack.c.bf16 %v325, %v318
        %v368 = vpack.c.bf16 %v326, %v319
        %v369 = vpack.c.bf16 %v327, %v320
        %v370 = vpack.c.bf16 %v328, %v321
        %v371 = vpack.c.bf16 %v329, %v322
        %v372 = vpack.c.bf16 %v330, %v323
        %v373 = vpack.c.bf16 %v338, %v331
        %v374 = vpack.c.bf16 %v339, %v332
        %v375 = vpack.c.bf16 %v340, %v333
        %v376 = vpack.c.bf16 %v341, %v334
        %v377 = vpack.c.bf16 %v342, %v335
        %v378 = vpack.c.bf16 %v343, %v336
        %v379 = vpack.c.bf16 %v344, %v337
        %v380 = vpack.c.bf16 %v352, %v345
        %v381 = vpack.c.bf16 %v353, %v346
        %v382 = vpack.c.bf16 %v354, %v347
        %v383 = vpack.c.bf16 %v355, %v348
        %v384 = vpack.c.bf16 %v356, %v349
        %v385 = vpack.c.bf16 %v357, %v350
        %v386 = vpack.c.bf16 %v358, %v351
        %v387 = vld [vmem:[%s4] sm:$0xff]
        %v388 = vld [vmem:[#allocation4] sm:$0xf]
        %v389 = vld [vmem:[#allocation4 + $0x4] sm:$0xf]
        %v390 = vld [vmem:[#allocation4 + $0x8] sm:$0xf]
        %v391 = vld [vmem:[#allocation4 + $0xc] sm:$0xf]
        %v392 = vld [vmem:[#allocation4 + $0x10] sm:$0xf]
        %v393 = vld [vmem:[#allocation4 + $0x14] sm:$0xf]
        %v394 = vld [vmem:[#allocation4 + $0x18] sm:$0xf]
        %v395 = vld [vmem:[#allocation4 + $0x1c] sm:$0xf]
        %v396 = vld [vmem:[#allocation4 + $0x20] sm:$0xf]
        %v397 = vld [vmem:[#allocation4 + $0x24] sm:$0xf]
        %v398 = vld [vmem:[#allocation4 + $0x28] sm:$0xf]
        %v399 = vld [vmem:[#allocation4 + $0x2c] sm:$0xf]
        %v400 = vld [vmem:[#allocation4 + $0x30] sm:$0xf]
        %v401 = vld [vmem:[#allocation4 + $0x34] sm:$0xf]
        %v402 = vld [vmem:[#allocation4 + $0x38] sm:$0xf]
        %v403 = vld [vmem:[#allocation4 + $0x3c] sm:$0xf]
        %v404 = vld [vmem:[#allocation4 + $0x40] sm:$0xf]
        %v405 = vld [vmem:[#allocation4 + $0x44] sm:$0xf]
        %v406 = vld [vmem:[#allocation4 + $0x48] sm:$0xf]
        %v407 = vld [vmem:[#allocation4 + $0x4c] sm:$0xf]
        %v408 = vld [vmem:[#allocation4 + $0x50] sm:$0xf]
        %v409 = vld [vmem:[#allocation4 + $0x54] sm:$0xf]
        %v410 = vld [vmem:[#allocation4 + $0x58] sm:$0xf]
        %v411 = vld [vmem:[#allocation4 + $0x5c] sm:$0xf]
        %v412 = vld [vmem:[#allocation4 + $0x60] sm:$0xf]
        %v413 = vld [vmem:[#allocation4 + $0x64] sm:$0xf]
        %v414 = vld [vmem:[#allocation4 + $0x68] sm:$0xf]
        %v415 = vld [vmem:[#allocation4 + $0x6c] sm:$0xf]
        %v416 = vld [vmem:[#allocation4 + $0x70] sm:$0xf]
        %v417 = vld [vmem:[#allocation4 + $0x74] sm:$0xf]
        %v418 = vld [vmem:[#allocation4 + $0x78] sm:$0xf]
        %v419 = vld [vmem:[#allocation4 + $0x7c] sm:$0xf]
        %v420 = vld [vmem:[#allocation4 + $0x80] sm:$0xf]
        %v421 = vld [vmem:[#allocation4 + $0x84] sm:$0xf]
        %v422 = vld [vmem:[#allocation4 + $0x88] sm:$0xf]
        %v423 = vld [vmem:[#allocation4 + $0x8c] sm:$0xf]
        %v424 = vld [vmem:[#allocation4 + $0x90] sm:$0xf]
        %v425 = vld [vmem:[#allocation4 + $0x94] sm:$0xf]
        %v426 = vld [vmem:[#allocation4 + $0x98] sm:$0xf]
        %v427 = vld [vmem:[#allocation4 + $0x9c] sm:$0xf]
        %v428 = vld [vmem:[#allocation4 + $0xa0] sm:$0xf]
        %v429 = vld [vmem:[#allocation4 + $0xa4] sm:$0xf]
        %v430 = vld [vmem:[#allocation4 + $0xa8] sm:$0xf]
        %v431 = vld [vmem:[#allocation4 + $0xac] sm:$0xf]
        %v432 = vld [vmem:[#allocation4 + $0xb0] sm:$0xf]
        %v433 = vld [vmem:[#allocation4 + $0xb4] sm:$0xf]
        %v434 = vld [vmem:[#allocation4 + $0xb8] sm:$0xf]
        %v435 = vld [vmem:[#allocation4 + $0xbc] sm:$0xf]
        %v436 = vld [vmem:[#allocation4 + $0xc0] sm:$0xf]
        %v437 = vld [vmem:[#allocation4 + $0xc4] sm:$0xf]
        %v438 = vld [vmem:[#allocation4 + $0xc8] sm:$0xf]
        %v439 = vld [vmem:[#allocation4 + $0xcc] sm:$0xf]
        %v440 = vld [vmem:[#allocation4 + $0xd0] sm:$0xf]
        %v441 = vld [vmem:[#allocation4 + $0xd4] sm:$0xf]
        %v442 = vld [vmem:[#allocation4 + $0xd8] sm:$0xf]
        %v443 = vld [vmem:[#allocation4 + $0xdc] sm:$0xf]
        %v444 = vld [vmem:[#allocation4 + $0xe0] sm:$0xf]
        %v445 = vld [vmem:[#allocation4 + $0xe4] sm:$0xf]
        %v446 = vld [vmem:[#allocation4 + $0xe8] sm:$0xf]
        %v447 = vld [vmem:[#allocation4 + $0xec] sm:$0xf]
        %v448 = vld [vmem:[#allocation4 + $0xf0] sm:$0xf]
        %v449 = vld [vmem:[#allocation4 + $0xf4] sm:$0xf]
        %v450 = vld [vmem:[#allocation4 + $0xf8] sm:$0xf]
        %v451 = vld [vmem:[#allocation4 + $0xfc] sm:$0xf]
        %v452 = vld [vmem:[#allocation4 + $0x100] sm:$0xf]
        %v453 = vld [vmem:[#allocation4 + $0x104] sm:$0xf]
        %v454 = vld [vmem:[#allocation4 + $0x108] sm:$0xf]
        %v455 = vld [vmem:[#allocation4 + $0x10c] sm:$0xf]
        %v456 = vld [vmem:[#allocation4 + $0x110] sm:$0xf]
        %v457 = vld [vmem:[#allocation4 + $0x114] sm:$0xf]
        %v458 = vld [vmem:[#allocation4 + $0x118] sm:$0xf]
        %v459 = vld [vmem:[#allocation4 + $0x11c] sm:$0xf]
        %v460 = vld [vmem:[#allocation4 + $0x120] sm:$0xf]
        %v461 = vld [vmem:[#allocation4 + $0x124] sm:$0xf]
        %v462 = vld [vmem:[#allocation4 + $0x128] sm:$0xf]
        %v463 = vld [vmem:[#allocation4 + $0x12c] sm:$0xf]
        %v464 = vld [vmem:[#allocation4 + $0x130] sm:$0xf]
        %v465 = vld [vmem:[#allocation4 + $0x134] sm:$0xf]
        %v466 = vld [vmem:[#allocation4 + $0x138] sm:$0xf]
        %v467 = vld [vmem:[#allocation4 + $0x13c] sm:$0xf]
        %v468 = vld [vmem:[#allocation4 + $0x140] sm:$0xf]
        %v469 = vld [vmem:[#allocation4 + $0x144] sm:$0xf]
        %v470 = vld [vmem:[#allocation4 + $0x148] sm:$0xf]
        %v471 = vld [vmem:[#allocation4 + $0x14c] sm:$0xf]
        %v472 = vld [vmem:[#allocation4 + $0x150] sm:$0xf]
        %v473 = vld [vmem:[#allocation4 + $0x154] sm:$0xf]
        %v474 = vld [vmem:[#allocation4 + $0x158] sm:$0xf]
        %v475 = vld [vmem:[#allocation4 + $0x15c] sm:$0xf]
        %v476 = vld [vmem:[#allocation4 + $0x160] sm:$0xf]
        %v477 = vld [vmem:[#allocation4 + $0x164] sm:$0xf]
        %v478 = vld [vmem:[#allocation4 + $0x168] sm:$0xf]
        %v479 = vld [vmem:[#allocation4 + $0x16c] sm:$0xf]
        %v480 = vld [vmem:[#allocation4 + $0x170] sm:$0xf]
        %v481 = vld [vmem:[#allocation4 + $0x174] sm:$0xf]
        %v482 = vld [vmem:[#allocation4 + $0x178] sm:$0xf]
        %v483 = vld [vmem:[#allocation4 + $0x17c] sm:$0xf]
        %v484 = vld [vmem:[#allocation4 + $0x180] sm:$0xf]
        %v485 = vld [vmem:[#allocation4 + $0x184] sm:$0xf]
        %v486 = vlaneseq
        %v487 = vshrl.u32 %v486, 7
        %v488 = vsub.s32 0, %v487
        %v489 = vrot.slane %v387, %v488
        %v588 = vunpack.c.l.b16 %v388
        %v589 = vunpack.c.l.b16 %v389
        %v590 = vunpack.c.l.b16 %v390
        %v591 = vunpack.c.l.b16 %v391
        %v592 = vunpack.c.l.b16 %v392
        %v593 = vunpack.c.l.b16 %v393
        %v594 = vunpack.c.l.b16 %v394
        %v595 = vunpack.c.l.b16 %v395
        %v596 = vunpack.c.l.b16 %v396
        %v597 = vunpack.c.l.b16 %v397
        %v598 = vunpack.c.l.b16 %v398
        %v599 = vunpack.c.l.b16 %v399
        %v600 = vunpack.c.l.b16 %v400
        %v601 = vunpack.c.l.b16 %v401
        %v602 = vunpack.c.l.b16 %v402
        %v603 = vunpack.c.l.b16 %v403
        %v604 = vunpack.c.l.b16 %v404
        %v605 = vunpack.c.l.b16 %v405
        %v606 = vunpack.c.l.b16 %v406
        %v607 = vunpack.c.l.b16 %v407
        %v608 = vunpack.c.l.b16 %v408
        %v609 = vunpack.c.l.b16 %v409
        %v610 = vunpack.c.l.b16 %v410
        %v611 = vunpack.c.l.b16 %v411
        %v612 = vunpack.c.l.b16 %v412
        %v613 = vunpack.c.l.b16 %v413
        %v614 = vunpack.c.l.b16 %v414
        %v615 = vunpack.c.l.b16 %v415
        %v616 = vunpack.c.l.b16 %v416
        %v617 = vunpack.c.l.b16 %v417
        %v618 = vunpack.c.l.b16 %v418
        %v619 = vunpack.c.l.b16 %v419
        %v620 = vunpack.c.l.b16 %v420
        %v621 = vunpack.c.l.b16 %v421
        %v622 = vunpack.c.l.b16 %v422
        %v623 = vunpack.c.l.b16 %v423
        %v624 = vunpack.c.l.b16 %v424
        %v625 = vunpack.c.l.b16 %v425
        %v626 = vunpack.c.l.b16 %v426
        %v627 = vunpack.c.l.b16 %v427
        %v628 = vunpack.c.l.b16 %v428
        %v629 = vunpack.c.l.b16 %v429
        %v630 = vunpack.c.l.b16 %v430
        %v631 = vunpack.c.l.b16 %v431
        %v632 = vunpack.c.l.b16 %v432
        %v633 = vunpack.c.l.b16 %v433
        %v634 = vunpack.c.l.b16 %v434
        %v635 = vunpack.c.l.b16 %v435
        %v636 = vunpack.c.l.b16 %v436
        %v637 = vunpack.c.l.b16 %v437
        %v638 = vunpack.c.l.b16 %v438
        %v639 = vunpack.c.l.b16 %v439
        %v640 = vunpack.c.l.b16 %v440
        %v641 = vunpack.c.l.b16 %v441
        %v642 = vunpack.c.l.b16 %v442
        %v643 = vunpack.c.l.b16 %v443
        %v644 = vunpack.c.l.b16 %v444
        %v645 = vunpack.c.l.b16 %v445
        %v646 = vunpack.c.l.b16 %v446
        %v647 = vunpack.c.l.b16 %v447
        %v648 = vunpack.c.l.b16 %v448
        %v649 = vunpack.c.l.b16 %v449
        %v650 = vunpack.c.l.b16 %v450
        %v651 = vunpack.c.l.b16 %v451
        %v652 = vunpack.c.l.b16 %v452
        %v653 = vunpack.c.l.b16 %v453
        %v654 = vunpack.c.l.b16 %v454
        %v655 = vunpack.c.l.b16 %v455
        %v656 = vunpack.c.l.b16 %v456
        %v657 = vunpack.c.l.b16 %v457
        %v658 = vunpack.c.l.b16 %v458
        %v659 = vunpack.c.l.b16 %v459
        %v660 = vunpack.c.l.b16 %v460
        %v661 = vunpack.c.l.b16 %v461
        %v662 = vunpack.c.l.b16 %v462
        %v663 = vunpack.c.l.b16 %v463
        %v664 = vunpack.c.l.b16 %v464
        %v665 = vunpack.c.l.b16 %v465
        %v666 = vunpack.c.l.b16 %v466
        %v667 = vunpack.c.l.b16 %v467
        %v668 = vunpack.c.l.b16 %v468
        %v669 = vunpack.c.l.b16 %v469
        %v670 = vunpack.c.l.b16 %v470
        %v671 = vunpack.c.l.b16 %v471
        %v672 = vunpack.c.l.b16 %v472
        %v673 = vunpack.c.l.b16 %v473
        %v674 = vunpack.c.l.b16 %v474
        %v675 = vunpack.c.l.b16 %v475
        %v676 = vunpack.c.l.b16 %v476
        %v677 = vunpack.c.l.b16 %v477
        %v678 = vunpack.c.l.b16 %v478
        %v679 = vunpack.c.l.b16 %v479
        %v680 = vunpack.c.l.b16 %v480
        %v681 = vunpack.c.l.b16 %v481
        %v682 = vunpack.c.l.b16 %v482
        %v683 = vunpack.c.l.b16 %v483
        %v684 = vunpack.c.l.b16 %v484
        %v685 = vunpack.c.l.b16 %v485
        %v686 = vpack.c.b16 %v589, %v588
        %v687 = vpack.c.b16 %v591, %v590
        %v688 = vpack.c.b16 %v593, %v592
        %v689 = vpack.c.b16 %v595, %v594
        %v690 = vpack.c.b16 %v597, %v596
        %v691 = vpack.c.b16 %v599, %v598
        %v692 = vpack.c.b16 %v601, %v600
        %v693 = vpack.c.b16 %v603, %v602
        %v694 = vpack.c.b16 %v605, %v604
        %v695 = vpack.c.b16 %v607, %v606
        %v696 = vpack.c.b16 %v609, %v608
        %v697 = vpack.c.b16 %v611, %v610
        %v698 = vpack.c.b16 %v613, %v612
        %v699 = vpack.c.b16 %v615, %v614
        %v700 = vpack.c.b16 %v617, %v616
        %v701 = vpack.c.b16 %v619, %v618
        %v702 = vpack.c.b16 %v621, %v620
        %v703 = vpack.c.b16 %v623, %v622
        %v704 = vpack.c.b16 %v625, %v624
        %v705 = vpack.c.b16 %v627, %v626
        %v706 = vpack.c.b16 %v629, %v628
        %v707 = vpack.c.b16 %v631, %v630
        %v708 = vpack.c.b16 %v633, %v632
        %v709 = vpack.c.b16 %v635, %v634
        %v710 = vpack.c.b16 %v637, %v636
        %v711 = vpack.c.b16 %v639, %v638
        %v712 = vpack.c.b16 %v641, %v640
        %v713 = vpack.c.b16 %v643, %v642
        %v714 = vpack.c.b16 %v645, %v644
        %v715 = vpack.c.b16 %v647, %v646
        %v716 = vpack.c.b16 %v649, %v648
        %v717 = vpack.c.b16 %v651, %v650
        %v718 = vpack.c.b16 %v653, %v652
        %v719 = vpack.c.b16 %v655, %v654
        %v720 = vpack.c.b16 %v657, %v656
        %v721 = vpack.c.b16 %v659, %v658
        %v722 = vpack.c.b16 %v661, %v660
        %v723 = vpack.c.b16 %v663, %v662
        %v724 = vpack.c.b16 %v665, %v664
        %v725 = vpack.c.b16 %v667, %v666
        %v726 = vpack.c.b16 %v669, %v668
        %v727 = vpack.c.b16 %v671, %v670
        %v728 = vpack.c.b16 %v673, %v672
        %v729 = vpack.c.b16 %v675, %v674
        %v730 = vpack.c.b16 %v677, %v676
        %v731 = vpack.c.b16 %v679, %v678
        %v732 = vpack.c.b16 %v681, %v680
        %v733 = vpack.c.b16 %v683, %v682
        %v734 = vpack.c.b16 %v685, %v684
        %vm784 = vcmask 130048
        %v786 = vsel %vm784, %v365, 0
        %v789 = vsel %vm784, %v372, 0
        %v792 = vsel %vm784, %v379, 0
        %v795 = vsel %vm784, %v386, 0
        %797 = vmatprep.subr.bf16.mxu0 0
        %798 = vmatpush1.bf16.msra.mxu0 %v686
        %799 = vmatprep.subr.bf16.mxu0 0
        %800 = vmatpush1.bf16.msra.mxu0 %v687
        %801 = vmatprep.subr.bf16.mxu0 0
        %802 = vmatpush1.bf16.msra.mxu0 %v688
        %803 = vmatprep.subr.bf16.mxu0 0
        %804 = vmatpush1.bf16.msra.mxu0 %v689
        %805 = vmatprep.subr.bf16.mxu0 0
        %806 = vmatpush1.bf16.msra.mxu0 %v690
        %807 = vmatprep.subr.bf16.mxu0 0
        %808 = vmatpush1.bf16.msra.mxu0 %v691
        %809 = vmatprep.subr.bf16.mxu0 0
        %810 = vmatpush1.bf16.msra.mxu0 %v692
        %811 = vmatprep.subr.bf16.mxu0 0
        %812 = vmatpush1.bf16.msra.mxu0 %v693
        %813 = vmatprep.subr.bf16.mxu0 0
        %814 = vmatpush1.bf16.msra.mxu0 %v694
        %815 = vmatprep.subr.bf16.mxu0 0
        %816 = vmatpush1.bf16.msra.mxu0 %v695
        %817 = vmatprep.subr.bf16.mxu0 0
        %818 = vmatpush1.bf16.msra.mxu0 %v696
        %819 = vmatprep.subr.bf16.mxu0 0
        %820 = vmatpush1.bf16.msra.mxu0 %v697
        %821 = vmatprep.subr.bf16.mxu0 0
        %822 = vmatpush1.bf16.msra.mxu0 %v698
        %823 = vmatprep.subr.bf16.mxu0 0
        %824 = vmatpush1.bf16.msra.mxu0 %v699
        %825 = vmatprep.subr.bf16.mxu0 0
        %826 = vmatpush1.bf16.msra.mxu0 %v700
        %827 = vmatprep.subr.bf16.mxu0 0
        %828 = vmatpush1.bf16.msra.mxu0 %v701
        %829 = vmatprep.mubr.bf16.mxu0 %v360
        %830 = vmatmul.mubr.bf16.gmra.mrb[0].mxu0 %v359
        %v831 = vpop.f32.mrb[0].mxu0
        %v832 = vadd.f32 %v489, %v831
        %v833 = vpop.f32.mrb[0].mxu0
        %v834 = vpop.f32.mrb[0].mxu0
        %v835 = vadd.f32 %v489, %v834
        %v836 = vpop.f32.mrb[0].mxu0
        %837 = vmatprep.mubr.bf16.mxu0 %v367
        %838 = vmatmul.mubr.bf16.gmra.mrb[0].mxu0 %v366
        %v839 = vpop.f32.mrb[0].mxu0
        %v840 = vadd.f32 %v489, %v839
        %v841 = vpop.f32.mrb[0].mxu0
        %v842 = vpop.f32.mrb[0].mxu0
        %v843 = vadd.f32 %v489, %v842
        %v844 = vpop.f32.mrb[0].mxu0
        %845 = vmatprep.mubr.bf16.mxu0 %v374
        %846 = vmatmul.mubr.bf16.gmra.mrb[0].mxu0 %v373
        %v847 = vpop.f32.mrb[0].mxu0
        %v848 = vadd.f32 %v489, %v847
        %v849 = vpop.f32.mrb[0].mxu0
        %v850 = vpop.f32.mrb[0].mxu0
        %v851 = vadd.f32 %v489, %v850
        %v852 = vpop.f32.mrb[0].mxu0
        %853 = vmatprep.mubr.bf16.mxu0 %v381
        %854 = vmatmul.mubr.bf16.gmra.mrb[0].mxu0 %v380
        %v855 = vpop.f32.mrb[0].mxu0
        %v856 = vadd.f32 %v489, %v855
        %v857 = vpop.f32.mrb[0].mxu0
        %v858 = vpop.f32.mrb[0].mxu0
        %v859 = vadd.f32 %v489, %v858
        %v860 = vpop.f32.mrb[0].mxu0
        %861 = vdwg.mxu0
        %862 = vmatprep.subr.bf16.mxu0 0
        %863 = vmatpush1.bf16.msra.mxu0 %v702
        %864 = vmatprep.subr.bf16.mxu0 0
        %865 = vmatpush1.bf16.msra.mxu0 %v703
        %866 = vmatprep.subr.bf16.mxu0 0
        %867 = vmatpush1.bf16.msra.mxu0 %v704
        %868 = vmatprep.subr.bf16.mxu0 0
        %869 = vmatpush1.bf16.msra.mxu0 %v705
        %870 = vmatprep.subr.bf16.mxu0 0
        %871 = vmatpush1.bf16.msra.mxu0 %v706
        %872 = vmatprep.subr.bf16.mxu0 0
        %873 = vmatpush1.bf16.msra.mxu0 %v707
        %874 = vmatprep.subr.bf16.mxu0 0
        %875 = vmatpush1.bf16.msra.mxu0 %v708
        %876 = vmatprep.subr.bf16.mxu0 0
        %877 = vmatpush1.bf16.msra.mxu0 %v709
        %878 = vmatprep.subr.bf16.mxu0 0
        %879 = vmatpush1.bf16.msra.mxu0 %v710
        %880 = vmatprep.subr.bf16.mxu0 0
        %881 = vmatpush1.bf16.msra.mxu0 %v711
        %882 = vmatprep.subr.bf16.mxu0 0
        %883 = vmatpush1.bf16.msra.mxu0 %v712
        %884 = vmatprep.subr.bf16.mxu0 0
        %885 = vmatpush1.bf16.msra.mxu0 %v713
        %886 = vmatprep.subr.bf16.mxu0 0
        %887 = vmatpush1.bf16.msra.mxu0 %v714
        %888 = vmatprep.subr.bf16.mxu0 0
        %889 = vmatpush1.bf16.msra.mxu0 %v715
        %890 = vmatprep.subr.bf16.mxu0 0
        %891 = vmatpush1.bf16.msra.mxu0 %v716
        %892 = vmatprep.subr.bf16.mxu0 0
        %893 = vmatpush1.bf16.msra.mxu0 %v717
        %894 = vmatprep.mubr.bf16.mxu0 %v362
        %895 = vmatmul.mubr.bf16.gmra.mrb[0].mxu0 %v361
        %v896 = vpop.f32.mrb[0].mxu0
        %v897 = vadd.f32 %v832, %v896
        %v898 = vpop.f32.mrb[0].mxu0
        %v899 = vpop.f32.mrb[0].mxu0
        %v900 = vadd.f32 %v835, %v899
        %v901 = vpop.f32.mrb[0].mxu0
        %902 = vmatprep.mubr.bf16.mxu0 %v369
        %903 = vmatmul.mubr.bf16.gmra.mrb[0].mxu0 %v368
        %v904 = vpop.f32.mrb[0].mxu0
        %v905 = vadd.f32 %v840, %v904
        %v906 = vpop.f32.mrb[0].mxu0
        %v907 = vpop.f32.mrb[0].mxu0
        %v908 = vadd.f32 %v843, %v907
        %v909 = vpop.f32.mrb[0].mxu0
        %910 = vmatprep.mubr.bf16.mxu0 %v376
        %911 = vmatmul.mubr.bf16.gmra.mrb[0].mxu0 %v375
        %v912 = vpop.f32.mrb[0].mxu0
        %v913 = vadd.f32 %v848, %v912
        %v914 = vpop.f32.mrb[0].mxu0
        %v915 = vpop.f32.mrb[0].mxu0
        %v916 = vadd.f32 %v851, %v915
        %v917 = vpop.f32.mrb[0].mxu0
        %918 = vmatprep.mubr.bf16.mxu0 %v383
        %919 = vmatmul.mubr.bf16.gmra.mrb[0].mxu0 %v382
        %v920 = vpop.f32.mrb[0].mxu0
        %v921 = vadd.f32 %v856, %v920
        %v922 = vpop.f32.mrb[0].mxu0
        %v923 = vpop.f32.mrb[0].mxu0
        %v924 = vadd.f32 %v859, %v923
        %v925 = vpop.f32.mrb[0].mxu0
        %926 = vdwg.mxu0
        %927 = vmatprep.subr.bf16.mxu0 0
        %928 = vmatpush1.bf16.msra.mxu0 %v718
        %929 = vmatprep.subr.bf16.mxu0 0
        %930 = vmatpush1.bf16.msra.mxu0 %v719
        %931 = vmatprep.subr.bf16.mxu0 0
        %932 = vmatpush1.bf16.msra.mxu0 %v720
        %933 = vmatprep.subr.bf16.mxu0 0
        %934 = vmatpush1.bf16.msra.mxu0 %v721
        %935 = vmatprep.subr.bf16.mxu0 0
        %936 = vmatpush1.bf16.msra.mxu0 %v722
        %937 = vmatprep.subr.bf16.mxu0 0
        %938 = vmatpush1.bf16.msra.mxu0 %v723
        %939 = vmatprep.subr.bf16.mxu0 0
        %940 = vmatpush1.bf16.msra.mxu0 %v724
        %941 = vmatprep.subr.bf16.mxu0 0
        %942 = vmatpush1.bf16.msra.mxu0 %v725
        %943 = vmatprep.subr.bf16.mxu0 0
        %944 = vmatpush1.bf16.msra.mxu0 %v726
        %945 = vmatprep.subr.bf16.mxu0 0
        %946 = vmatpush1.bf16.msra.mxu0 %v727
        %947 = vmatprep.subr.bf16.mxu0 0
        %948 = vmatpush1.bf16.msra.mxu0 %v728
        %949 = vmatprep.subr.bf16.mxu0 0
        %950 = vmatpush1.bf16.msra.mxu0 %v729
        %951 = vmatprep.subr.bf16.mxu0 0
        %952 = vmatpush1.bf16.msra.mxu0 %v730
        %953 = vmatprep.subr.bf16.mxu0 0
        %954 = vmatpush1.bf16.msra.mxu0 %v731
        %955 = vmatprep.subr.bf16.mxu0 0
        %956 = vmatpush1.bf16.msra.mxu0 %v732
        %957 = vmatprep.subr.bf16.mxu0 0
        %958 = vmatpush1.bf16.msra.mxu0 %v733
        %959 = vmatprep.mubr.bf16.mxu0 %v364
        %960 = vmatmul.mubr.bf16.gmra.mrb[0].mxu0 %v363
        %v961 = vpop.f32.mrb[0].mxu0
        %v962 = vadd.f32 %v897, %v961
        %v963 = vpop.f32.mrb[0].mxu0
        %v964 = vpop.f32.mrb[0].mxu0
        %v965 = vadd.f32 %v900, %v964
        %v966 = vpop.f32.mrb[0].mxu0
        %967 = vmatprep.mubr.bf16.mxu0 %v371
        %968 = vmatmul.mubr.bf16.gmra.mrb[0].mxu0 %v370
        %v969 = vpop.f32.mrb[0].mxu0
        %v970 = vadd.f32 %v905, %v969
        %v971 = vpop.f32.mrb[0].mxu0
        %v972 = vpop.f32.mrb[0].mxu0
        %v973 = vadd.f32 %v908, %v972
        %v974 = vpop.f32.mrb[0].mxu0
        %975 = vmatprep.mubr.bf16.mxu0 %v378
        %976 = vmatmul.mubr.bf16.gmra.mrb[0].mxu0 %v377
        %v977 = vpop.f32.mrb[0].mxu0
        %v978 = vadd.f32 %v913, %v977
        %v979 = vpop.f32.mrb[0].mxu0
        %v980 = vpop.f32.mrb[0].mxu0
        %v981 = vadd.f32 %v916, %v980
        %v982 = vpop.f32.mrb[0].mxu0
        %983 = vmatprep.mubr.bf16.mxu0 %v385
        %984 = vmatmul.mubr.bf16.gmra.mrb[0].mxu0 %v384
        %v985 = vpop.f32.mrb[0].mxu0
        %v986 = vadd.f32 %v921, %v985
        %v987 = vpop.f32.mrb[0].mxu0
        %v988 = vpop.f32.mrb[0].mxu0
        %v989 = vadd.f32 %v924, %v988
        %v990 = vpop.f32.mrb[0].mxu0
        %991 = vdwg.mxu0
        %992 = vmatprep.subr.bf16.mxu0 0
        %993 = vmatpush1.bf16.msra.mxu0 %v734
        %994 = vmatprep.subr.bf16.mxu0 0
        %995 = vmatpush1.bf16.msra.mxu0 0
        %996 = vmatprep.subr.bf16.mxu0 0
        %997 = vmatpush1.bf16.msra.mxu0 0
        %998 = vmatprep.subr.bf16.mxu0 0
        %999 = vmatpush1.bf16.msra.mxu0 0
        %1000 = vmatprep.subr.bf16.mxu0 0
        %1001 = vmatpush1.bf16.msra.mxu0 0
        %1002 = vmatprep.subr.bf16.mxu0 0
        %1003 = vmatpush1.bf16.msra.mxu0 0
        %1004 = vmatprep.subr.bf16.mxu0 0
        %1005 = vmatpush1.bf16.msra.mxu0 0
        %1006 = vmatprep.subr.bf16.mxu0 0
        %1007 = vmatpush1.bf16.msra.mxu0 0
        %1008 = vmatprep.subr.bf16.mxu0 0
        %1009 = vmatpush1.bf16.msra.mxu0 0
        %1010 = vmatprep.subr.bf16.mxu0 0
        %1011 = vmatpush1.bf16.msra.mxu0 0
        %1012 = vmatprep.subr.bf16.mxu0 0
        %1013 = vmatpush1.bf16.msra.mxu0 0
        %1014 = vmatprep.subr.bf16.mxu0 0
        %1015 = vmatpush1.bf16.msra.mxu0 0
        %1016 = vmatprep.subr.bf16.mxu0 0
        %1017 = vmatpush1.bf16.msra.mxu0 0
        %1018 = vmatprep.subr.bf16.mxu0 0
        %1019 = vmatpush1.bf16.msra.mxu0 0
        %1020 = vmatprep.subr.bf16.mxu0 0
        %1021 = vmatpush1.bf16.msra.mxu0 0
        %1022 = vmatprep.subr.bf16.mxu0 0
        %1023 = vmatpush1.bf16.msra.mxu0 0
        %1024 = vmatprep.mubr.bf16.mxu0 0
        %1025 = vmatmul.mubr.bf16.gmra.mrb[0].mxu0 %v786
        %v1026 = vpop.f32.mrb[0].mxu0
        %v1027 = vadd.f32 %v962, %v1026
        %v1028 = vpop.f32.mrb[0].mxu0
        %v1029 = vpop.f32.mrb[0].mxu0
        %v1030 = vadd.f32 %v965, %v1029
        %v1031 = vpop.f32.mrb[0].mxu0
        %1032 = vmatprep.mubr.bf16.mxu0 0
        %1033 = vmatmul.mubr.bf16.gmra.mrb[0].mxu0 %v789
        %v1034 = vpop.f32.mrb[0].mxu0
        %v1035 = vadd.f32 %v970, %v1034
        %v1036 = vpop.f32.mrb[0].mxu0
        %v1037 = vpop.f32.mrb[0].mxu0
        %v1038 = vadd.f32 %v973, %v1037
        %v1039 = vpop.f32.mrb[0].mxu0
        %1040 = vmatprep.mubr.bf16.mxu0 0
        %1041 = vmatmul.mubr.bf16.gmra.mrb[0].mxu0 %v792
        %v1042 = vpop.f32.mrb[0].mxu0
        %v1043 = vadd.f32 %v978, %v1042
        %v1044 = vpop.f32.mrb[0].mxu0
        %v1045 = vpop.f32.mrb[0].mxu0
        %v1046 = vadd.f32 %v981, %v1045
        %v1047 = vpop.f32.mrb[0].mxu0
        %1048 = vmatprep.mubr.bf16.mxu0 0
        %1049 = vmatmul.mubr.bf16.gmra.mrb[0].mxu0 %v795
        %v1050 = vpop.f32.mrb[0].mxu0
        %v1051 = vadd.f32 %v986, %v1050
        %v1052 = vpop.f32.mrb[0].mxu0
        %v1053 = vpop.f32.mrb[0].mxu0
        %v1054 = vadd.f32 %v989, %v1053
        %v1055 = vpop.f32.mrb[0].mxu0
        %1056 = vdwg.mxu0
        %v1057 = vtanh.pop %v1027
        %v1058 = vtanh.pop %v1030
        %v1059 = vtanh.pop %v1035
        %v1060 = vtanh.pop %v1038
        %v1061 = vtanh.pop %v1043
        %v1062 = vtanh.pop %v1046
        %v1063 = vtanh.pop %v1051
        %v1064 = vtanh.pop %v1054
        %v1065 = vpack.c.bf16 %v1058, %v1057
        %v1066 = vpack.c.bf16 %v1060, %v1059
        %v1067 = vpack.c.bf16 %v1062, %v1061
        %v1068 = vpack.c.bf16 %v1064, %v1063
        %v1069 = vld [vmem:[#allocation6] sm:$0xf]
        %v1070 = vld [vmem:[#allocation6 + $0x4] sm:$0xf]
        %v1071 = vld [vmem:[#allocation6 + $0x8] sm:$0xf]
        %v1072 = vld [vmem:[#allocation6 + $0xc] sm:$0xf]
        %v1073 = vld [vmem:[#allocation6 + $0x10] sm:$0xf]
        %v1074 = vld [vmem:[#allocation6 + $0x14] sm:$0xf]
        %v1075 = vld [vmem:[#allocation6 + $0x18] sm:$0xf]
        %v1076 = vld [vmem:[#allocation6 + $0x1c] sm:$0xf]
        %v1077 = vld [vmem:[#allocation6 + $0x20] sm:$0xf]
        %v1078 = vld [vmem:[#allocation6 + $0x24] sm:$0xf]
        %v1079 = vld [vmem:[#allocation6 + $0x28] sm:$0xf]
        %v1080 = vld [vmem:[#allocation6 + $0x2c] sm:$0xf]
        %v1081 = vld [vmem:[#allocation6 + $0x30] sm:$0xf]
        %v1082 = vld [vmem:[#allocation6 + $0x34] sm:$0xf]
        %v1083 = vld [vmem:[#allocation6 + $0x38] sm:$0xf]
        %v1084 = vld [vmem:[#allocation6 + $0x3c] sm:$0xf]
        %v1085 = vlaneseq
        %v1086 = vshrl.u32 %v1085, 7
        %v1087 = vsub.s32 1, %v1086
        %v1088 = vrot.slane %v387, %v1087
        %v1105 = vunpack.c.l.b16 %v1069
        %v1106 = vunpack.c.l.b16 %v1070
        %v1107 = vunpack.c.l.b16 %v1071
        %v1108 = vunpack.c.l.b16 %v1072
        %v1109 = vunpack.c.l.b16 %v1073
        %v1110 = vunpack.c.l.b16 %v1074
        %v1111 = vunpack.c.l.b16 %v1075
        %v1112 = vunpack.c.l.b16 %v1076
        %v1113 = vunpack.c.l.b16 %v1077
        %v1114 = vunpack.c.l.b16 %v1078
        %v1115 = vunpack.c.l.b16 %v1079
        %v1116 = vunpack.c.l.b16 %v1080
        %v1117 = vunpack.c.l.b16 %v1081
        %v1118 = vunpack.c.l.b16 %v1082
        %v1119 = vunpack.c.l.b16 %v1083
        %v1120 = vunpack.c.l.b16 %v1084
        %v1121 = vpack.c.b16 %v1106, %v1105
        %v1122 = vpack.c.b16 %v1108, %v1107
        %v1123 = vpack.c.b16 %v1110, %v1109
        %v1124 = vpack.c.b16 %v1112, %v1111
        %v1125 = vpack.c.b16 %v1114, %v1113
        %v1126 = vpack.c.b16 %v1116, %v1115
        %v1127 = vpack.c.b16 %v1118, %v1117
        %v1128 = vpack.c.b16 %v1120, %v1119
        %1137 = vmatprep.subr.bf16.mxu0 0
        %1138 = vmatpush1.bf16.msra.mxu0 %v1121
        %1139 = vmatprep.subr.bf16.mxu0 0
        %1140 = vmatpush1.bf16.msra.mxu0 %v1122
        %1141 = vmatprep.subr.bf16.mxu0 0
        %1142 = vmatpush1.bf16.msra.mxu0 %v1123
        %1143 = vmatprep.subr.bf16.mxu0 0
        %1144 = vmatpush1.bf16.msra.mxu0 %v1124
        %1145 = vmatprep.subr.bf16.mxu0 0
        %1146 = vmatpush1.bf16.msra.mxu0 %v1125
        %1147 = vmatprep.subr.bf16.mxu0 0
        %1148 = vmatpush1.bf16.msra.mxu0 %v1126
        %1149 = vmatprep.subr.bf16.mxu0 0
        %1150 = vmatpush1.bf16.msra.mxu0 %v1127
        %1151 = vmatprep.subr.bf16.mxu0 0
        %1152 = vmatpush1.bf16.msra.mxu0 %v1128
        %1153 = vmatprep.subr.bf16.mxu0 0
        %1154 = vmatpush1.bf16.msra.mxu0 0
        %1155 = vmatprep.subr.bf16.mxu0 0
        %1156 = vmatpush1.bf16.msra.mxu0 0
        %1157 = vmatprep.subr.bf16.mxu0 0
        %1158 = vmatpush1.bf16.msra.mxu0 0
        %1159 = vmatprep.subr.bf16.mxu0 0
        %1160 = vmatpush1.bf16.msra.mxu0 0
        %1161 = vmatprep.subr.bf16.mxu0 0
        %1162 = vmatpush1.bf16.msra.mxu0 0
        %1163 = vmatprep.subr.bf16.mxu0 0
        %1164 = vmatpush1.bf16.msra.mxu0 0
        %1165 = vmatprep.subr.bf16.mxu0 0
        %1166 = vmatpush1.bf16.msra.mxu0 0
        %1167 = vmatprep.subr.bf16.mxu0 0
        %1168 = vmatpush1.bf16.msra.mxu0 0
        %1169 = vmatprep.mubr.bf16.mxu0 0
        %1170 = vmatmul.mubr.bf16.gmra.mrb[0].mxu0 %v1065
        %v1171 = vpop.f32.mrb[0].mxu0
        %v1172 = vadd.f32 %v1088, %v1171
        %v1173 = vpop.f32.mrb[0].mxu0
        %v1174 = vpop.f32.mrb[0].mxu0
        %v1175 = vadd.f32 %v1088, %v1174
        %v1176 = vpop.f32.mrb[0].mxu0
        %1177 = vmatprep.mubr.bf16.mxu0 0
        %1178 = vmatmul.mubr.bf16.gmra.mrb[0].mxu0 %v1066
        %v1179 = vpop.f32.mrb[0].mxu0
        %v1180 = vadd.f32 %v1088, %v1179
        %v1181 = vpop.f32.mrb[0].mxu0
        %v1182 = vpop.f32.mrb[0].mxu0
        %v1183 = vadd.f32 %v1088, %v1182
        %v1184 = vpop.f32.mrb[0].mxu0
        %1185 = vmatprep.mubr.bf16.mxu0 0
        %1186 = vmatmul.mubr.bf16.gmra.mrb[0].mxu0 %v1067
        %v1187 = vpop.f32.mrb[0].mxu0
        %v1188 = vadd.f32 %v1088, %v1187
        %v1189 = vpop.f32.mrb[0].mxu0
        %v1190 = vpop.f32.mrb[0].mxu0
        %v1191 = vadd.f32 %v1088, %v1190
        %v1192 = vpop.f32.mrb[0].mxu0
        %1193 = vmatprep.mubr.bf16.mxu0 0
        %1194 = vmatmul.mubr.bf16.gmra.mrb[0].mxu0 %v1068
        %v1195 = vpop.f32.mrb[0].mxu0
        %v1196 = vadd.f32 %v1088, %v1195
        %v1197 = vpop.f32.mrb[0].mxu0
        %v1198 = vpop.f32.mrb[0].mxu0
        %v1199 = vadd.f32 %v1088, %v1198
        %v1200 = vpop.f32.mrb[0].mxu0
        %1201 = vdwg.mxu0
        %v1202 = vtanh.pop %v1172
        %v1203 = vtanh.pop %v1175
        %v1204 = vtanh.pop %v1180
        %v1205 = vtanh.pop %v1183
        %v1206 = vtanh.pop %v1188
        %v1207 = vtanh.pop %v1191
        %v1208 = vtanh.pop %v1196
        %v1209 = vtanh.pop %v1199
        %v1210 = vpack.c.bf16 %v1203, %v1202
        %v1211 = vpack.c.bf16 %v1205, %v1204
        %v1212 = vpack.c.bf16 %v1207, %v1206
        %v1213 = vpack.c.bf16 %v1209, %v1208
        %v1214 = vld [vmem:[#allocation7] sm:$0xf]
        %v1215 = vld [vmem:[#allocation7 + $0x4] sm:$0xf]
        %v1216 = vld [vmem:[#allocation7 + $0x8] sm:$0xf]
        %v1217 = vld [vmem:[#allocation7 + $0xc] sm:$0xf]
        %v1218 = vld [vmem:[#allocation7 + $0x10] sm:$0xf]
        %v1219 = vld [vmem:[#allocation7 + $0x14] sm:$0xf]
        %v1220 = vld [vmem:[#allocation7 + $0x18] sm:$0xf]
        %v1221 = vld [vmem:[#allocation7 + $0x1c] sm:$0xf]
        %v1222 = vld [vmem:[#allocation7 + $0x20] sm:$0xf]
        %v1223 = vld [vmem:[#allocation7 + $0x24] sm:$0xf]
        %v1224 = vld [vmem:[#allocation7 + $0x28] sm:$0xf]
        %v1225 = vld [vmem:[#allocation7 + $0x2c] sm:$0xf]
        %v1226 = vld [vmem:[#allocation7 + $0x30] sm:$0xf]
        %v1227 = vld [vmem:[#allocation7 + $0x34] sm:$0xf]
        %v1228 = vld [vmem:[#allocation7 + $0x38] sm:$0xf]
        %v1229 = vld [vmem:[#allocation7 + $0x3c] sm:$0xf]
        %v1230 = vlaneseq
        %v1231 = vshrl.u32 %v1230, 7
        %v1232 = vsub.s32 2, %v1231
        %v1233 = vrot.slane %v387, %v1232
        %v1250 = vunpack.c.l.b16 %v1214
        %v1251 = vunpack.c.l.b16 %v1215
        %v1252 = vunpack.c.l.b16 %v1216
        %v1253 = vunpack.c.l.b16 %v1217
        %v1254 = vunpack.c.l.b16 %v1218
        %v1255 = vunpack.c.l.b16 %v1219
        %v1256 = vunpack.c.l.b16 %v1220
        %v1257 = vunpack.c.l.b16 %v1221
        %v1258 = vunpack.c.l.b16 %v1222
        %v1259 = vunpack.c.l.b16 %v1223
        %v1260 = vunpack.c.l.b16 %v1224
        %v1261 = vunpack.c.l.b16 %v1225
        %v1262 = vunpack.c.l.b16 %v1226
        %v1263 = vunpack.c.l.b16 %v1227
        %v1264 = vunpack.c.l.b16 %v1228
        %v1265 = vunpack.c.l.b16 %v1229
        %v1266 = vpack.c.b16 %v1251, %v1250
        %v1267 = vpack.c.b16 %v1253, %v1252
        %v1268 = vpack.c.b16 %v1255, %v1254
        %v1269 = vpack.c.b16 %v1257, %v1256
        %v1270 = vpack.c.b16 %v1259, %v1258
        %v1271 = vpack.c.b16 %v1261, %v1260
        %v1272 = vpack.c.b16 %v1263, %v1262
        %v1273 = vpack.c.b16 %v1265, %v1264
        %1282 = vmatprep.subr.bf16.mxu0 0
        %1283 = vmatpush1.bf16.msra.mxu0 %v1266
        %1284 = vmatprep.subr.bf16.mxu0 0
        %1285 = vmatpush1.bf16.msra.mxu0 %v1267
        %1286 = vmatprep.subr.bf16.mxu0 0
        %1287 = vmatpush1.bf16.msra.mxu0 %v1268
        %1288 = vmatprep.subr.bf16.mxu0 0
        %1289 = vmatpush1.bf16.msra.mxu0 %v1269
        %1290 = vmatprep.subr.bf16.mxu0 0
        %1291 = vmatpush1.bf16.msra.mxu0 %v1270
        %1292 = vmatprep.subr.bf16.mxu0 0
        %1293 = vmatpush1.bf16.msra.mxu0 %v1271
        %1294 = vmatprep.subr.bf16.mxu0 0
        %1295 = vmatpush1.bf16.msra.mxu0 %v1272
        %1296 = vmatprep.subr.bf16.mxu0 0
        %1297 = vmatpush1.bf16.msra.mxu0 %v1273
        %1298 = vmatprep.subr.bf16.mxu0 0
        %1299 = vmatpush1.bf16.msra.mxu0 0
        %1300 = vmatprep.subr.bf16.mxu0 0
        %1301 = vmatpush1.bf16.msra.mxu0 0
        %1302 = vmatprep.subr.bf16.mxu0 0
        %1303 = vmatpush1.bf16.msra.mxu0 0
        %1304 = vmatprep.subr.bf16.mxu0 0
        %1305 = vmatpush1.bf16.msra.mxu0 0
        %1306 = vmatprep.subr.bf16.mxu0 0
        %1307 = vmatpush1.bf16.msra.mxu0 0
        %1308 = vmatprep.subr.bf16.mxu0 0
        %1309 = vmatpush1.bf16.msra.mxu0 0
        %1310 = vmatprep.subr.bf16.mxu0 0
        %1311 = vmatpush1.bf16.msra.mxu0 0
        %1312 = vmatprep.subr.bf16.mxu0 0
        %1313 = vmatpush1.bf16.msra.mxu0 0
        %1314 = vmatprep.mubr.bf16.mxu0 0
        %1315 = vmatmul.mubr.bf16.gmra.mrb[0].mxu0 %v1210
        %v1316 = vpop.f32.mrb[0].mxu0
        %v1317 = vadd.f32 %v1233, %v1316
        %v1318 = vpop.f32.mrb[0].mxu0
        %v1319 = vpop.f32.mrb[0].mxu0
        %v1320 = vadd.f32 %v1233, %v1319
        %v1321 = vpop.f32.mrb[0].mxu0
        %1322 = vmatprep.mubr.bf16.mxu0 0
        %1323 = vmatmul.mubr.bf16.gmra.mrb[0].mxu0 %v1211
        %v1324 = vpop.f32.mrb[0].mxu0
        %v1325 = vadd.f32 %v1233, %v1324
        %v1326 = vpop.f32.mrb[0].mxu0
        %v1327 = vpop.f32.mrb[0].mxu0
        %v1328 = vadd.f32 %v1233, %v1327
        %v1329 = vpop.f32.mrb[0].mxu0
        %1330 = vmatprep.mubr.bf16.mxu0 0
        %1331 = vmatmul.mubr.bf16.gmra.mrb[0].mxu0 %v1212
        %v1332 = vpop.f32.mrb[0].mxu0
        %v1333 = vadd.f32 %v1233, %v1332
        %v1334 = vpop.f32.mrb[0].mxu0
        %v1335 = vpop.f32.mrb[0].mxu0
        %v1336 = vadd.f32 %v1233, %v1335
        %v1337 = vpop.f32.mrb[0].mxu0
        %1338 = vmatprep.mubr.bf16.mxu0 0
        %1339 = vmatmul.mubr.bf16.gmra.mrb[0].mxu0 %v1213
        %v1340 = vpop.f32.mrb[0].mxu0
        %v1341 = vadd.f32 %v1233, %v1340
        %v1342 = vpop.f32.mrb[0].mxu0
        %v1343 = vpop.f32.mrb[0].mxu0
        %v1344 = vadd.f32 %v1233, %v1343
        %v1345 = vpop.f32.mrb[0].mxu0
        %1346 = vdwg.mxu0
        %v1347 = vpack.c.bf16 %v1320, %v1317
        %v1348 = vpack.c.bf16 %v1328, %v1325
        %v1349 = vpack.c.bf16 %v1336, %v1333
        %v1350 = vpack.c.bf16 %v1344, %v1341
        %v1355 = vunpack.c.l.b16 %v1347
        %v1356 = vunpack.c.h.b16 %v1347
        %v1357 = vunpack.c.l.b16 %v1348
        %v1358 = vunpack.c.h.b16 %v1348
        %v1359 = vunpack.c.l.b16 %v1349
        %v1360 = vunpack.c.h.b16 %v1349
        %v1361 = vunpack.c.l.b16 %v1350
        %v1362 = vunpack.c.h.b16 %v1350
        %v1363 = vpack.c.b16 %v1355, %v1355
        %v1364 = vpack.c.b16 %v1356, %v1356
        %v1365 = vpack.c.b16 %v1357, %v1357
        %v1366 = vpack.c.b16 %v1358, %v1358
        %v1367 = vpack.c.b16 %v1359, %v1359
        %v1368 = vpack.c.b16 %v1360, %v1360
        %v1369 = vpack.c.b16 %v1361, %v1361
        %v1370 = vpack.c.b16 %v1362, %v1362
        %1379 = vst [vmem:[%s290] sm:$0xf] %v1363
        %1380 = vst [vmem:[%s290 + $0x4] sm:$0xf] %v1364
        %1381 = vst [vmem:[%s290 + $0x8] sm:$0xf] %v1365
        %1382 = vst [vmem:[%s290 + $0xc] sm:$0xf] %v1366
        %1383 = vst [vmem:[%s290 + $0x10] sm:$0xf] %v1367
        %1384 = vst [vmem:[%s290 + $0x14] sm:$0xf] %v1368
        %1385 = vst [vmem:[%s290 + $0x18] sm:$0xf] %v1369
        %1386 = vst [vmem:[%s290 + $0x1c] sm:$0xf] %v1370
        %s1387 = sand.u32 %s139, 1
        %s1388 = sand.u32 %s139, 1
        %s1389 = smul.addr %s1388, 32
        %s1390 = scalar_lea.vmem [#allocation9], %s1389
        // Predicated region
        $region57: #{network_forward.1} parent=39 // pred_check
          %p1391 = pneg %p149
        $region58: #{network_forward.1} parent=39 // pred_check_branch
          %1393 = sbr.rel (%p1391) target = $region60
        $region59: #{network_forward.1} parent=39 // pred_region
          %s1394 = smul.u32 8, %s21
          %s1395 = ssub.s32 13, %s1394
          %p1396 = scmp.lt.s32.totalorder %s1395, 8
          %s1397 = scalar_select %p1396, %s1395, 8
          %s1398 = smul.u32 64, %s1397
          %p1399 = scmp.ne.s32.totalorder 0, %s1398
          %s1400 = smul.addr %s1394, 4
          %s1401 = scalar_lea.vmem %s5, %s1400
          // Predicated region
          $region61: #{network_forward.1} parent=59 // pred_check
            %p1402 = pneg %p1399
          $region62: #{network_forward.1} parent=59 // pred_check_branch
            %1404 = sbr.rel (%p1402) target = $region64
          $region63: #{network_forward.1} parent=59 // pred_region
            // Predicated region
            $region65: #{network_forward.1} parent=63 // pred_check
              _
            $region66: #{network_forward.1} parent=63 // pred_check_branch
              %1406 = sbr.rel target = $region68
            $region67: #{network_forward.1} parent=63 // pred_region
              // Predicated region
              $region87: #{network_forward.1} parent=67 // pred_check
                _
              $region88: #{network_forward.1} parent=67 // pred_check_branch
                %1469 = sbr.rel (0) target = $region90
              $region89: #{network_forward.1} parent=67 // pred_region
                %s1471 = sshrl.u32 %s1397, 3
                // While loop
                $region91: #{network_forward.1} parent=89 // loop_pre_header
                  _
                $region92: #{network_forward.1} parent=89 // loop_header
                  %s1473 = sphi 0, %s1475
                  %p1474 = scmp.ge.s32.totalorder %s1473, %s1471
                  %s1478 = sphi 0, %s1499
                  %s1479 = sphi %s1390, %s1502
                  %s1480 = sphi %s1401, %s1503
                $region93: #{network_forward.1} parent=89 // loop_header_branch
                  %1477 = sbr.rel (%p1474) target = $region97
                $region94: #{network_forward.1} parent=89 // loop_body
                  %v1481 = vld [vmem:[%s1479] sm:$0xf]
                  %1482 = vst [vmem:[%s1480] sm:$0xf] %v1481
                  %v1483 = vld [vmem:[%s1479 + $0x4] sm:$0xf]
                  %1484 = vst [vmem:[%s1480 + $0x4] sm:$0xf] %v1483
                  %v1485 = vld [vmem:[%s1479 + $0x8] sm:$0xf]
                  %1486 = vst [vmem:[%s1480 + $0x8] sm:$0xf] %v1485
                  %v1487 = vld [vmem:[%s1479 + $0xc] sm:$0xf]
                  %1488 = vst [vmem:[%s1480 + $0xc] sm:$0xf] %v1487
                  %v1489 = vld [vmem:[%s1479 + $0x10] sm:$0xf]
                  %1490 = vst [vmem:[%s1480 + $0x10] sm:$0xf] %v1489
                  %v1491 = vld [vmem:[%s1479 + $0x14] sm:$0xf]
                  %1492 = vst [vmem:[%s1480 + $0x14] sm:$0xf] %v1491
                  %v1493 = vld [vmem:[%s1479 + $0x18] sm:$0xf]
                  %1494 = vst [vmem:[%s1480 + $0x18] sm:$0xf] %v1493
                  %v1495 = vld [vmem:[%s1479 + $0x1c] sm:$0xf]
                  %1496 = vst [vmem:[%s1480 + $0x1c] sm:$0xf] %v1495
                  %s1497 = sadd.s32 1, %s1478
                  %p1498 = scmp.ge.s32.totalorder %s1497, %s1471
                  %s1499 = scalar_select %p1498, 0, %s1497
                  %s1500 = smul.u32 %s1499, 32
                  %s1501 = smul.u32 %s1499, 32
                  %s1502 = scalar_lea.vmem %s1390, %s1500 [#allocation9]
                  %s1503 = scalar_lea.vmem %s1401, %s1501
                $region95: #{network_forward.1} parent=89 // loop_footer
                  %s1475 = sadd.s32 %s1473, 1
                $region96: #{network_forward.1} parent=89 // loop_footer_branch
                  %1472 = sbr.rel target = $region92
                $region97: #{network_forward.1} parent=89 // loop_exit
                  _
                %s1504 = sshrl.u32 %s1397, 3
                %s1505 = sand.u32 %s1397, 7
                %s1506 = smul.u32 %s1504, 8
                %s1507 = smul.u32 4, %s1506
                %s1508 = scalar_lea.vmem %s1390, %s1507 [#allocation9]
                %s1509 = smul.u32 4, %s1506
                %s1510 = scalar_lea.vmem %s1401, %s1509
                // While loop
                $region98: #{network_forward.1} parent=89 // loop_pre_header
                  _
                $region99: #{network_forward.1} parent=89 // loop_header
                  %s1512 = sphi 0, %s1514
                  %p1513 = scmp.ge.s32.totalorder %s1512, %s1505
                  %s1517 = sphi 0, %s1524
                  %s1518 = sphi %s1508, %s1527
                  %s1519 = sphi %s1510, %s1528
                $region100: #{network_forward.1} parent=89 // loop_header_branch
                  %1516 = sbr.rel (%p1513) target = $region104
                $region101: #{network_forward.1} parent=89 // loop_body
                  %v1520 = vld [vmem:[%s1518] sm:$0xf]
                  %1521 = vst [vmem:[%s1519] sm:$0xf] %v1520
                  %s1522 = sadd.s32 1, %s1517
                  %p1523 = scmp.ge.s32.totalorder %s1522, %s1505
                  %s1524 = scalar_select %p1523, 0, %s1522
                  %s1525 = smul.u32 %s1524, 4
                  %s1526 = smul.u32 %s1524, 4
                  %s1527 = scalar_lea.vmem %s1508, %s1525 [#allocation9]
                  %s1528 = scalar_lea.vmem %s1510, %s1526
                $region102: #{network_forward.1} parent=89 // loop_footer
                  %s1514 = sadd.s32 %s1512, 1
                $region103: #{network_forward.1} parent=89 // loop_footer_branch
                  %1511 = sbr.rel target = $region99
                $region104: #{network_forward.1} parent=89 // loop_exit
                  _
              $region90: #{network_forward.1} parent=67 // pred_fallthru
                _
            $region68: #{network_forward.1} parent=63 // pred_fallthru
              _
            // Predicated region
            $region69: #{network_forward.1} parent=63 // pred_check
              _
            $region70: #{network_forward.1} parent=63 // pred_check_branch
              %1408 = sbr.rel (0) target = $region72
            $region71: #{network_forward.1} parent=63 // pred_region
              %s1410 = sshrl.u32 %s1397, 3
              // While loop
              $region73: #{network_forward.1} parent=71 // loop_pre_header
                _
              $region74: #{network_forward.1} parent=71 // loop_header
                %s1412 = sphi 0, %s1414
                %p1413 = scmp.ge.s32.totalorder %s1412, %s1410
                %s1417 = sphi 0, %s1438
                %s1418 = sphi %s1390, %s1441
                %s1419 = sphi %s1401, %s1442
              $region75: #{network_forward.1} parent=71 // loop_header_branch
                %1416 = sbr.rel (%p1413) target = $region79
              $region76: #{network_forward.1} parent=71 // loop_body
                %v1420 = vld [vmem:[%s1418] sm:$0xf]
                %1421 = vst [vmem:[%s1419] sm:$0xf] %v1420
                %v1422 = vld [vmem:[%s1418 + $0x4] sm:$0xf]
                %1423 = vst [vmem:[%s1419 + $0x4] sm:$0xf] %v1422
                %v1424 = vld [vmem:[%s1418 + $0x8] sm:$0xf]
                %1425 = vst [vmem:[%s1419 + $0x8] sm:$0xf] %v1424
                %v1426 = vld [vmem:[%s1418 + $0xc] sm:$0xf]
                %1427 = vst [vmem:[%s1419 + $0xc] sm:$0xf] %v1426
                %v1428 = vld [vmem:[%s1418 + $0x10] sm:$0xf]
                %1429 = vst [vmem:[%s1419 + $0x10] sm:$0xf] %v1428
                %v1430 = vld [vmem:[%s1418 + $0x14] sm:$0xf]
                %1431 = vst [vmem:[%s1419 + $0x14] sm:$0xf] %v1430
                %v1432 = vld [vmem:[%s1418 + $0x18] sm:$0xf]
                %1433 = vst [vmem:[%s1419 + $0x18] sm:$0xf] %v1432
                %v1434 = vld [vmem:[%s1418 + $0x1c] sm:$0xf]
                %1435 = vst [vmem:[%s1419 + $0x1c] sm:$0xf] %v1434
                %s1436 = sadd.s32 1, %s1417
                %p1437 = scmp.ge.s32.totalorder %s1436, %s1410
                %s1438 = scalar_select %p1437, 0, %s1436
                %s1439 = smul.u32 %s1438, 32
                %s1440 = smul.u32 %s1438, 32
                %s1441 = scalar_lea.vmem %s1390, %s1439 [#allocation9]
                %s1442 = scalar_lea.vmem %s1401, %s1440
              $region77: #{network_forward.1} parent=71 // loop_footer
                %s1414 = sadd.s32 %s1412, 1
              $region78: #{network_forward.1} parent=71 // loop_footer_branch
                %1411 = sbr.rel target = $region74
              $region79: #{network_forward.1} parent=71 // loop_exit
                _
              %s1443 = sshrl.u32 %s1397, 3
              %s1444 = sand.u32 %s1397, 7
              %s1445 = smul.u32 %s1443, 8
              %s1446 = smul.u32 4, %s1445
              %s1447 = scalar_lea.vmem %s1390, %s1446 [#allocation9]
              %s1448 = smul.u32 4, %s1445
              %s1449 = scalar_lea.vmem %s1401, %s1448
              // While loop
              $region80: #{network_forward.1} parent=71 // loop_pre_header
                _
              $region81: #{network_forward.1} parent=71 // loop_header
                %s1451 = sphi 0, %s1453
                %p1452 = scmp.ge.s32.totalorder %s1451, %s1444
                %s1456 = sphi 0, %s1463
                %s1457 = sphi %s1447, %s1466
                %s1458 = sphi %s1449, %s1467
              $region82: #{network_forward.1} parent=71 // loop_header_branch
                %1455 = sbr.rel (%p1452) target = $region86
              $region83: #{network_forward.1} parent=71 // loop_body
                %v1459 = vld [vmem:[%s1457] sm:$0xf]
                %1460 = vst [vmem:[%s1458] sm:$0xf] %v1459
                %s1461 = sadd.s32 1, %s1456
                %p1462 = scmp.ge.s32.totalorder %s1461, %s1444
                %s1463 = scalar_select %p1462, 0, %s1461
                %s1464 = smul.u32 %s1463, 4
                %s1465 = smul.u32 %s1463, 4
                %s1466 = scalar_lea.vmem %s1447, %s1464 [#allocation9]
                %s1467 = scalar_lea.vmem %s1449, %s1465
              $region84: #{network_forward.1} parent=71 // loop_footer
                %s1453 = sadd.s32 %s1451, 1
              $region85: #{network_forward.1} parent=71 // loop_footer_branch
                %1450 = sbr.rel target = $region81
              $region86: #{network_forward.1} parent=71 // loop_exit
                _
            $region72: #{network_forward.1} parent=63 // pred_fallthru
              _
          $region64: #{network_forward.1} parent=59 // pred_fallthru
            _
          %1529 = vnop
        $region60: #{network_forward.1} parent=39 // pred_fallthru
          _
      $region40: #{network_forward.1} parent=5 // pred_fallthru
        _
      %p1530 = scmp.le.s32.totalorder 2, %s16
      // Predicated region
      $region105: #{network_forward.1} parent=5 // pred_check
        %p1531 = pneg %p1530
      $region106: #{network_forward.1} parent=5 // pred_check_branch
        %1533 = sbr.rel (%p1531) target = $region108
      $region107: #{network_forward.1} parent=5 // pred_region
        %s1534 = ssub.s32 %s16, 2
        // Predicated region
        $region109: #{network_forward.1} parent=107 // pred_check
          %p1535 = pneg %p155
        $region110: #{network_forward.1} parent=107 // pred_check_branch
          %1537 = sbr.rel (%p1535) target = $region112
        $region111: #{network_forward.1} parent=107 // pred_region
          %s1538 = sand.u32 %s140, 1
          %s1539 = sand.u32 %s140, 1
          %s1540 = smul.addr %s1539, 32
          %s1541 = scalar_lea.vmem [#allocation9], %s1540
        $region112: #{network_forward.1} parent=107 // pred_fallthru
          _
      $region108: #{network_forward.1} parent=5 // pred_fallthru
        _
    $region6: #{network_forward.1} parent=1 // loop_footer
      %s20 = sadd.s32 1, %s16
    $region7: #{network_forward.1} parent=1 // loop_footer_branch
      %15 = sbr.rel target = $region3
    $region8: #{network_forward.1} parent=1 // loop_exit
      _
    %1542 = vsyncpa [#allocation3], 1
    %s1543 = scalar_lea.sflag [#allocation3], 1
    %1544 = vsyncpa %s1543, 1
    %1545 = vsyncpa [#allocation5], 1
    %1546 = vsyncpa [#allocation8], 1

</llo_original>
